<compile_context>
chip_gen: v7x
topology: tpu7x:2x2x1
jax: 0.10.0
libtpu: 0.0.40
codegen_flags: <defaults>
</compile_context>

<pallas_src>
import functools

import jax
import jax.numpy as jnp
from jax import lax
from jax.experimental import pallas as pl
from jax.experimental.pallas import tpu as pltpu


def _round_up(x: int, m: int) -> int:
    return ((x + m - 1) // m) * m


def _block_attention_kernel(q_ref, k_ref, v_ref, out_ref, attn_ref, *,
                            scale: float, binarize: bool,
                            heads_per_step: int, d_head: int,
                            s_len: int, s_pad: int, exp_bf16: bool):
    """One (batch, head-group, T-tile) grid step.

    q_ref       : (1, tq,    heads_per_step * d_head)
    k_ref/v_ref : (1, s_pad, heads_per_step * d_head)
    out_ref     : (1, tq,    heads_per_step * d_head)
    attn_ref    : (1, tq,    heads_per_step * s_pad)
    """
    q_all = q_ref[0]                    # (tq, hc*d_head), input dtype
    k_all = k_ref[0]                    # (s_pad, hc*d_head)
    v_all = v_ref[0]                    # (s_pad, hc*d_head)

    for h in range(heads_per_step):     # static, unrolled
        sl = slice(h * d_head, (h + 1) * d_head)
        qh = q_all[:, sl]
        kh = k_all[:, sl]
        vh = v_all[:, sl]

        # (tq, s_pad) scores on the MXU; contract last axes -> no k transpose.
        scores = lax.dot_general(
            qh, kh, dimension_numbers=(((1,), (1,)), ((), ())),
            preferred_element_type=jnp.float32)

        if s_pad > s_len:               # mask the lane padding of the source axis
            col = lax.broadcasted_iota(jnp.int32, scores.shape, 1)
            scores = jnp.where(col < s_len, scores, jnp.float32(-1e30))

        if binarize:
            # argmax(softmax(x)) == argmax(x): skip exp/sum/recip.  Ties break
            # by first occurrence (same as jnp.argmax).
            row_max = jnp.max(scores, axis=-1, keepdims=True)
            iota = lax.broadcasted_iota(jnp.int32, scores.shape, 1)
            first = jnp.min(jnp.where(scores >= row_max, iota, s_pad),
                            axis=-1, keepdims=True)
            attn = (iota == first).astype(jnp.float32)
        else:
            scores = scores * scale     # d_head**-0.5 / temp, applied in f32
            row_max = jnp.max(scores, axis=-1, keepdims=True)
            shifted = scores - row_max
            if exp_bf16:                # bf16 EUP exp (v6e / v7x only)
                e = jnp.exp(shifted.astype(jnp.bfloat16)).astype(jnp.float32)
            else:
                e = jnp.exp(shifted)
            denom = jnp.sum(e, axis=-1, keepdims=True)
            attn = e * pl.reciprocal(denom, approx=True)

        out_h = jnp.dot(attn.astype(vh.dtype), vh,
                        preferred_element_type=jnp.float32)

        # Per-head immediate stores (no list accumulation / concatenate).
        out_ref[0, :, h * d_head:(h + 1) * d_head] = out_h.astype(out_ref.dtype)
        attn_ref[0, :, h * s_pad:(h + 1) * s_pad] = attn.astype(attn_ref.dtype)


def _choose_heads_per_step(num_blocks: int, d_head: int) -> int:
    # Smallest head group whose q/out lane extent is 128-aligned; attn
    # alignment is handled separately via source-length lane padding.
    for hc in range(1, num_blocks + 1):
        if num_blocks % hc == 0 and (hc * d_head) % 128 == 0:
            return hc
    return num_blocks                   # full d_model block -> always legal


def block_attention(q, k, v, *, num_blocks: int, temp: float = 1.0,
                    binarize: bool = False, attn_dtype=jnp.bfloat16):
    """q: (B, T, d_model), k/v: (B, S, d_model).

    Returns (output (B,T,d_model), output_blocks (B,T,num_blocks,d_head),
             attn (B,T,num_blocks,S)) matching the PyTorch module.
    attn is returned in `attn_dtype` (bf16 by default to halve HBM writeback).
    """
    B, T, d_model = q.shape
    _, S, _ = k.shape
    assert d_model % num_blocks == 0, "d_model must be divisible by num_blocks"
    d_head = d_model // num_blocks
    scale = float(d_head) ** -0.5 / float(temp)

    hc = _choose_heads_per_step(num_blocks, d_head)
    num_groups = num_blocks // hc

    # Lane-pad the source axis so per-head attn slabs are 128-aligned.
    s_pad = S if S % 128 == 0 else _round_up(S, 128)
    if s_pad != S:
        k = jnp.pad(k, ((0, 0), (0, s_pad - S), (0, 0)))
        v = jnp.pad(v, ((0, 0), (0, s_pad - S), (0, 0)))

    # ---- VMEM-budgeted T tile -------------------------------------------
    in_sz = q.dtype.itemsize
    attn_sz = jnp.dtype(attn_dtype).itemsize
    # bytes per T-row: (q + out tiles) + attn tile, each double-buffered
    row_bytes = 2 * (2 * hc * d_head * in_sz + hc * s_pad * attn_sz)
    # K + V tiles, double-buffered (constant w.r.t. tq)
    fixed_bytes = 2 * 2 * s_pad * hc * d_head * in_sz
    try:
        vmem_cap = int(pltpu.get_tpu_info().vmem_capacity_bytes)
    except Exception:
        vmem_cap = 64 * 1024 * 1024     # conservative (v7x per-core)
    budget = max(8 << 20, min(28 << 20, vmem_cap // 2 - (8 << 20)))

    t_full = _round_up(T, 8)
    if fixed_bytes + t_full * row_bytes <= budget:
        tq = t_full                      # whole (padded) T in one step
    else:
        cap = max(8, (budget - fixed_bytes) // row_bytes)
        tq = (cap // 256) * 256 if cap >= 256 else (cap // 8) * 8
        tq = max(tq, 8)
    t_pad = _round_up(T, tq)             # no "tq = T" fallback; pad instead
    if t_pad != T:
        q = jnp.pad(q, ((0, 0), (0, t_pad - T), (0, 0)))
    num_t = t_pad // tq

    step_bytes = fixed_bytes + tq * row_bytes
    vmem_limit = max(step_bytes + (8 << 20), 32 << 20)
    vmem_limit = int(min(vmem_limit,
                         max(vmem_cap - (12 << 20), step_bytes + (4 << 20))))

    # bf16 exp only where the EUP supports it (v6e / v7x); f32 on v5e & older.
    try:
        kind = jax.devices()[0].device_kind.lower()
    except Exception:
        kind = ""
    exp_bf16 = ("v6" in kind) or ("v7" in kind)

    kernel = functools.partial(
        _block_attention_kernel, scale=scale, binarize=bool(binarize),
        heads_per_step=hc, d_head=d_head, s_len=S, s_pad=s_pad,
        exp_bf16=exp_bf16)

    q_spec = pl.BlockSpec((1, tq, hc * d_head), lambda b, g, t: (b, t, g))
    kv_spec = pl.BlockSpec((1, s_pad, hc * d_head), lambda b, g, t: (b, 0, g))
    out_spec = pl.BlockSpec((1, tq, hc * d_head), lambda b, g, t: (b, t, g))
    attn_spec = pl.BlockSpec((1, tq, hc * s_pad), lambda b, g, t: (b, t, g))

    cost = pl.CostEstimate(
        flops=4 * B * T * S * d_model,
        transcendentals=0 if binarize else B * T * num_blocks * S,
        bytes_accessed=(B * T * d_model * in_sz            # q read
                        + 2 * B * S * d_model * in_sz      # k, v reads
                        + B * T * d_model * in_sz          # out write
                        + B * T * num_blocks * S * attn_sz))  # attn write

    out_flat, attn_flat = pl.pallas_call(
        kernel,
        out_shape=(
            jax.ShapeDtypeStruct((B, t_pad, d_model), q.dtype),
            jax.ShapeDtypeStruct((B, t_pad, num_blocks * s_pad), attn_dtype),
        ),
        grid_spec=pltpu.PrefetchScalarGridSpec(
            num_scalar_prefetch=0,
            grid=(B, num_groups, num_t),
            in_specs=[q_spec, kv_spec, kv_spec],
            out_specs=[out_spec, attn_spec],
        ),
        compiler_params=pltpu.CompilerParams(
            dimension_semantics=("parallel", "parallel", "parallel"),
            vmem_limit_bytes=vmem_limit),
        cost_estimate=cost,
    )(q, k, v)

    # Only cheap slices/reshapes below -- no transposes.
    output = out_flat[:, :T] if t_pad != T else out_flat       # (B,T,d_model)
    out_blocks = output.reshape(B, T, num_blocks, d_head)       # (B,T,nb,Dh)
    attn = attn_flat[:, :T] if t_pad != T else attn_flat
    attn = attn.reshape(B, T, num_blocks, s_pad)
    if s_pad != S:
        attn = attn[..., :S]                                    # (B,T,nb,S)
    return output, out_blocks, attn


def _reference(q, k, v, *, num_blocks, temp, binarize):
    B, T, d_model = q.shape
    _, S, _ = k.shape
    d_head = d_model // num_blocks
    qh = q.reshape(B, T, num_blocks, d_head).transpose(0, 2, 1, 3)
    kh = k.reshape(B, S, num_blocks, d_head).transpose(0, 2, 1, 3)
    vh = v.reshape(B, S, num_blocks, d_head).transpose(0, 2, 1, 3)
    qh = qh * d_head ** -0.5
    scores = jnp.einsum("bhtd,bhsd->bhts", qh, kh) / temp
    attn = jax.nn.softmax(scores, axis=-1)
    if binarize:
        attn = jax.nn.one_hot(jnp.argmax(attn, axis=-1), S, dtype=attn.dtype)
    out = jnp.einsum("bhts,bhsd->bhtd", attn, vh)
    out_blocks = out.transpose(0, 2, 1, 3)
    return (out_blocks.reshape(B, T, d_model), out_blocks,
            attn.transpose(0, 2, 1, 3))


if __name__ == "__main__":
    # small shapes consistent with the module
    B, T, S = 2, 8, 8
    d_model, num_blocks = 32, 4
    temp = 1.0
    d_head = d_model // num_blocks

    key = jax.random.PRNGKey(0)
    kq, kk, kv = jax.random.split(key, 3)
    q = jax.random.normal(kq, (B, T, d_model), dtype=jnp.float32)
    k = jax.random.normal(kk, (B, S, d_model), dtype=jnp.float32)
    v = jax.random.normal(kv, (B, S, d_model), dtype=jnp.float32)

    # softmax path (binarize=False); attn stored as bf16 by default
    out, out_blocks, attn = block_attention(
        q, k, v, num_blocks=num_blocks, temp=temp, binarize=False)
    jax.block_until_ready((out, out_blocks, attn))
    ref_out, ref_out_blocks, ref_attn = _reference(
        q, k, v, num_blocks=num_blocks, temp=temp, binarize=False)

    assert out.shape == (B, T, d_model)
    assert out_blocks.shape == (B, T, num_blocks, d_head)
    assert attn.shape == (B, T, num_blocks, S)
    # tolerance covers bf16 attn storage, bf16 exp (v6e/v7x) and approx recip
    assert jnp.allclose(out, ref_out, atol=5e-2, rtol=5e-2)
    assert jnp.allclose(out_blocks, ref_out_blocks, atol=5e-2, rtol=5e-2)
    assert jnp.allclose(attn.astype(jnp.float32), ref_attn, atol=2e-2, rtol=2e-2)

    # binarize path (softmax skipped, one-hot straight from scores -> exact)
    out_b, out_blocks_b, attn_b = block_attention(
        q, k, v, num_blocks=num_blocks, temp=temp, binarize=True)
    jax.block_until_ready((out_b, out_blocks_b, attn_b))
    ref_out_b, ref_out_blocks_b, ref_attn_b = _reference(
        q, k, v, num_blocks=num_blocks, temp=temp, binarize=True)

    assert jnp.allclose(attn_b.astype(jnp.float32), ref_attn_b, atol=1e-5, rtol=1e-5)
    assert jnp.allclose(out_b, ref_out_b, atol=1e-5, rtol=1e-5)
    assert jnp.allclose(out_blocks_b, ref_out_blocks_b, atol=1e-5, rtol=1e-5)

    print("KERNEL_OK")
</pallas_src>

<mosaic_0001>
module attributes {stable_mosaic.version = 11 : i64} {
  func.func @_block_attention_kernel(%arg0: i32, %arg1: i32, %arg2: i32, %arg3: memref<1x8x32xf32, #tpu.memory_space<vmem>>, %arg4: memref<1x128x32xf32, #tpu.memory_space<vmem>>, %arg5: memref<1x128x32xf32, #tpu.memory_space<vmem>>, %arg6: memref<1x8x32xf32, #tpu.memory_space<vmem>>, %arg7: memref<1x8x512xbf16, #tpu.memory_space<vmem>>) attributes {dimension_semantics = [#tpu.dimension_semantics<parallel>, #tpu.dimension_semantics<parallel>, #tpu.dimension_semantics<parallel>], iteration_bounds = array<i64: 2, 1, 1>, scalar_prefetch = 0 : i64, scratch_operands = 0 : i64, tpu.core_type = #tpu.core_type<tc>, window_params = [{transform_indices = @transform_0, window_bounds = array<i64: 1, 8, 32>}, {transform_indices = @transform_1, window_bounds = array<i64: 1, 128, 32>}, {transform_indices = @transform_2, window_bounds = array<i64: 1, 128, 32>}, {transform_indices = @transform_3, window_bounds = array<i64: 1, 8, 32>}, {transform_indices = @transform_4, window_bounds = array<i64: 1, 8, 512>}]} {
    %c0 = arith.constant 0 : index
    %c0_0 = arith.constant 0 : index
    %c0_1 = arith.constant 0 : index
    %0 = vector.load %arg3[%c0, %c0_0, %c0_1] : memref<1x8x32xf32, #tpu.memory_space<vmem>>, vector<1x8x32xf32>
    %1 = vector.shape_cast %0 : vector<1x8x32xf32> to vector<8x32xf32>
    %c0_2 = arith.constant 0 : index
    %c0_3 = arith.constant 0 : index
    %c0_4 = arith.constant 0 : index
    %2 = vector.load %arg4[%c0_2, %c0_3, %c0_4] : memref<1x128x32xf32, #tpu.memory_space<vmem>>, vector<1x128x32xf32>
    %3 = vector.shape_cast %2 : vector<1x128x32xf32> to vector<128x32xf32>
    %c0_5 = arith.constant 0 : index
    %c0_6 = arith.constant 0 : index
    %c0_7 = arith.constant 0 : index
    %4 = vector.load %arg5[%c0_5, %c0_6, %c0_7] : memref<1x128x32xf32, #tpu.memory_space<vmem>>, vector<1x128x32xf32>
    %5 = vector.shape_cast %4 : vector<1x128x32xf32> to vector<128x32xf32>
    %6 = vector.extract_strided_slice %1 {offsets = [0, 0], sizes = [8, 8], strides = [1, 1]} : vector<8x32xf32> to vector<8x8xf32>
    %7 = vector.extract_strided_slice %3 {offsets = [0, 0], sizes = [128, 8], strides = [1, 1]} : vector<128x32xf32> to vector<128x8xf32>
    %8 = vector.extract_strided_slice %5 {offsets = [0, 0], sizes = [128, 8], strides = [1, 1]} : vector<128x32xf32> to vector<128x8xf32>
    %cst = arith.constant dense<0.000000e+00> : vector<8x128xf32>
    %9 = tpu.matmul %6, %7, %cst {dimension_numbers = #tpu.dot_dimension_numbers<[1], [1], [0], [0], [0, 0, 1, 0], [], []>} : vector<8x8xf32>, vector<128x8xf32>, vector<8x128xf32> -> vector<8x128xf32>
    %10 = tpu.iota {dimensions = array<i32: 1>} : vector<8x128xi32>
    %c8_i32 = arith.constant 8 : i32
    %11 = vector.broadcast %c8_i32 : i32 to vector<8x128xi32>
    %12 = arith.cmpi slt, %10, %11 : vector<8x128xi32>
    %cst_8 = arith.constant -1.000000e+30 : f32
    %13 = vector.broadcast %cst_8 : f32 to vector<8x128xf32>
    %14 = arith.select %12, %9, %13 : vector<8x128xi1>, vector<8x128xf32>
    %cst_9 = arith.constant 0.353553385 : f32
    %15 = vector.broadcast %cst_9 : f32 to vector<8x128xf32>
    %16 = arith.mulf %14, %15 : vector<8x128xf32>
    %cst_10 = arith.constant dense<0xFF800000> : vector<8xf32>
    %17 = vector.multi_reduction <maximumf>, %16, %cst_10 [1] : vector<8x128xf32> to vector<8xf32>
    %18 = vector.shape_cast %17 : vector<8xf32> to vector<8x1xf32>
    %19 = vector.broadcast %18 : vector<8x1xf32> to vector<8x128xf32>
    %20 = arith.subf %16, %19 : vector<8x128xf32>
    %21 = math.exp %20 : vector<8x128xf32>
    %cst_11 = arith.constant dense<0.000000e+00> : vector<8xf32>
    %22 = vector.multi_reduction <add>, %21, %cst_11 [1] : vector<8x128xf32> to vector<8xf32>
    %23 = vector.shape_cast %22 : vector<8xf32> to vector<8x1xf32>
    %24 = tpu.reciprocal %23 {approx = true} : vector<8x1xf32> -> vector<8x1xf32>
    %25 = vector.broadcast %24 : vector<8x1xf32> to vector<8x128xf32>
    %26 = arith.mulf %21, %25 : vector<8x128xf32>
    %cst_12 = arith.constant dense<0.000000e+00> : vector<8x8xf32>
    %27 = tpu.matmul %26, %8, %cst_12 {dimension_numbers = #tpu.dot_dimension_numbers<[1], [0], [0], [1], [0, 0, 1, 1], [], []>} : vector<8x128xf32>, vector<128x8xf32>, vector<8x8xf32> -> vector<8x8xf32>
    %c0_13 = arith.constant 0 : index
    %c0_14 = arith.constant 0 : index
    %c0_15 = arith.constant 0 : index
    %28 = vector.load %arg6[%c0_13, %c0_14, %c0_15] : memref<1x8x32xf32, #tpu.memory_space<vmem>>, vector<1x8x8xf32>
    %29 = vector.shape_cast %28 : vector<1x8x8xf32> to vector<8x8xf32>
    %30 = vector.shape_cast %27 : vector<8x8xf32> to vector<1x8x8xf32>
    tpu.vector_store %arg6[%c0_13, %c0_14, %c0_15], %30 {strides = array<i32>} : memref<1x8x32xf32, #tpu.memory_space<vmem>>, vector<1x8x8xf32>,
    %31 = arith.truncf %26 : vector<8x128xf32> to vector<8x128xbf16>
    %c0_16 = arith.constant 0 : index
    %c0_17 = arith.constant 0 : index
    %c0_18 = arith.constant 0 : index
    %32 = vector.load %arg7[%c0_16, %c0_17, %c0_18] : memref<1x8x512xbf16, #tpu.memory_space<vmem>>, vector<1x8x128xbf16>
    %33 = vector.shape_cast %32 : vector<1x8x128xbf16> to vector<8x128xbf16>
    %34 = vector.shape_cast %31 : vector<8x128xbf16> to vector<1x8x128xbf16>
    tpu.vector_store %arg7[%c0_16, %c0_17, %c0_18], %34 {strides = array<i32>} : memref<1x8x512xbf16, #tpu.memory_space<vmem>>, vector<1x8x128xbf16>,
    %35 = vector.extract_strided_slice %1 {offsets = [0, 8], sizes = [8, 8], strides = [1, 1]} : vector<8x32xf32> to vector<8x8xf32>
    %36 = vector.extract_strided_slice %3 {offsets = [0, 8], sizes = [128, 8], strides = [1, 1]} : vector<128x32xf32> to vector<128x8xf32>
    %37 = vector.extract_strided_slice %5 {offsets = [0, 8], sizes = [128, 8], strides = [1, 1]} : vector<128x32xf32> to vector<128x8xf32>
    %cst_19 = arith.constant dense<0.000000e+00> : vector<8x128xf32>
    %38 = tpu.matmul %35, %36, %cst_19 {dimension_numbers = #tpu.dot_dimension_numbers<[1], [1], [0], [0], [0, 0, 1, 0], [], []>} : vector<8x8xf32>, vector<128x8xf32>, vector<8x128xf32> -> vector<8x128xf32>
    %39 = tpu.iota {dimensions = array<i32: 1>} : vector<8x128xi32>
    %c8_i32_20 = arith.constant 8 : i32
    %40 = vector.broadcast %c8_i32_20 : i32 to vector<8x128xi32>
    %41 = arith.cmpi slt, %39, %40 : vector<8x128xi32>
    %cst_21 = arith.constant -1.000000e+30 : f32
    %42 = vector.broadcast %cst_21 : f32 to vector<8x128xf32>
    %43 = arith.select %41, %38, %42 : vector<8x128xi1>, vector<8x128xf32>
    %cst_22 = arith.constant 0.353553385 : f32
    %44 = vector.broadcast %cst_22 : f32 to vector<8x128xf32>
    %45 = arith.mulf %43, %44 : vector<8x128xf32>
    %cst_23 = arith.constant dense<0xFF800000> : vector<8xf32>
    %46 = vector.multi_reduction <maximumf>, %45, %cst_23 [1] : vector<8x128xf32> to vector<8xf32>
    %47 = vector.shape_cast %46 : vector<8xf32> to vector<8x1xf32>
    %48 = vector.broadcast %47 : vector<8x1xf32> to vector<8x128xf32>
    %49 = arith.subf %45, %48 : vector<8x128xf32>
    %50 = math.exp %49 : vector<8x128xf32>
    %cst_24 = arith.constant dense<0.000000e+00> : vector<8xf32>
    %51 = vector.multi_reduction <add>, %50, %cst_24 [1] : vector<8x128xf32> to vector<8xf32>
    %52 = vector.shape_cast %51 : vector<8xf32> to vector<8x1xf32>
    %53 = tpu.reciprocal %52 {approx = true} : vector<8x1xf32> -> vector<8x1xf32>
    %54 = vector.broadcast %53 : vector<8x1xf32> to vector<8x128xf32>
    %55 = arith.mulf %50, %54 : vector<8x128xf32>
    %cst_25 = arith.constant dense<0.000000e+00> : vector<8x8xf32>
    %56 = tpu.matmul %55, %37, %cst_25 {dimension_numbers = #tpu.dot_dimension_numbers<[1], [0], [0], [1], [0, 0, 1, 1], [], []>} : vector<8x128xf32>, vector<128x8xf32>, vector<8x8xf32> -> vector<8x8xf32>
    %c0_26 = arith.constant 0 : index
    %c0_27 = arith.constant 0 : index
    %c8 = arith.constant 8 : index
    %57 = vector.load %arg6[%c0_26, %c0_27, %c8] : memref<1x8x32xf32, #tpu.memory_space<vmem>>, vector<1x8x8xf32>
    %58 = vector.shape_cast %57 : vector<1x8x8xf32> to vector<8x8xf32>
    %59 = vector.shape_cast %56 : vector<8x8xf32> to vector<1x8x8xf32>
    tpu.vector_store %arg6[%c0_26, %c0_27, %c8], %59 {strides = array<i32>} : memref<1x8x32xf32, #tpu.memory_space<vmem>>, vector<1x8x8xf32>,
    %60 = arith.truncf %55 : vector<8x128xf32> to vector<8x128xbf16>
    %c0_28 = arith.constant 0 : index
    %c0_29 = arith.constant 0 : index
    %c128 = arith.constant 128 : index
    %61 = vector.load %arg7[%c0_28, %c0_29, %c128] : memref<1x8x512xbf16, #tpu.memory_space<vmem>>, vector<1x8x128xbf16>
    %62 = vector.shape_cast %61 : vector<1x8x128xbf16> to vector<8x128xbf16>
    %63 = vector.shape_cast %60 : vector<8x128xbf16> to vector<1x8x128xbf16>
    tpu.vector_store %arg7[%c0_28, %c0_29, %c128], %63 {strides = array<i32>} : memref<1x8x512xbf16, #tpu.memory_space<vmem>>, vector<1x8x128xbf16>,
    %64 = vector.extract_strided_slice %1 {offsets = [0, 16], sizes = [8, 8], strides = [1, 1]} : vector<8x32xf32> to vector<8x8xf32>
    %65 = vector.extract_strided_slice %3 {offsets = [0, 16], sizes = [128, 8], strides = [1, 1]} : vector<128x32xf32> to vector<128x8xf32>
    %66 = vector.extract_strided_slice %5 {offsets = [0, 16], sizes = [128, 8], strides = [1, 1]} : vector<128x32xf32> to vector<128x8xf32>
    %cst_30 = arith.constant dense<0.000000e+00> : vector<8x128xf32>
    %67 = tpu.matmul %64, %65, %cst_30 {dimension_numbers = #tpu.dot_dimension_numbers<[1], [1], [0], [0], [0, 0, 1, 0], [], []>} : vector<8x8xf32>, vector<128x8xf32>, vector<8x128xf32> -> vector<8x128xf32>
    %68 = tpu.iota {dimensions = array<i32: 1>} : vector<8x128xi32>
    %c8_i32_31 = arith.constant 8 : i32
    %69 = vector.broadcast %c8_i32_31 : i32 to vector<8x128xi32>
    %70 = arith.cmpi slt, %68, %69 : vector<8x128xi32>
    %cst_32 = arith.constant -1.000000e+30 : f32
    %71 = vector.broadcast %cst_32 : f32 to vector<8x128xf32>
    %72 = arith.select %70, %67, %71 : vector<8x128xi1>, vector<8x128xf32>
    %cst_33 = arith.constant 0.353553385 : f32
    %73 = vector.broadcast %cst_33 : f32 to vector<8x128xf32>
    %74 = arith.mulf %72, %73 : vector<8x128xf32>
    %cst_34 = arith.constant dense<0xFF800000> : vector<8xf32>
    %75 = vector.multi_reduction <maximumf>, %74, %cst_34 [1] : vector<8x128xf32> to vector<8xf32>
    %76 = vector.shape_cast %75 : vector<8xf32> to vector<8x1xf32>
    %77 = vector.broadcast %76 : vector<8x1xf32> to vector<8x128xf32>
    %78 = arith.subf %74, %77 : vector<8x128xf32>
    %79 = math.exp %78 : vector<8x128xf32>
    %cst_35 = arith.constant dense<0.000000e+00> : vector<8xf32>
    %80 = vector.multi_reduction <add>, %79, %cst_35 [1] : vector<8x128xf32> to vector<8xf32>
    %81 = vector.shape_cast %80 : vector<8xf32> to vector<8x1xf32>
    %82 = tpu.reciprocal %81 {approx = true} : vector<8x1xf32> -> vector<8x1xf32>
    %83 = vector.broadcast %82 : vector<8x1xf32> to vector<8x128xf32>
    %84 = arith.mulf %79, %83 : vector<8x128xf32>
    %cst_36 = arith.constant dense<0.000000e+00> : vector<8x8xf32>
    %85 = tpu.matmul %84, %66, %cst_36 {dimension_numbers = #tpu.dot_dimension_numbers<[1], [0], [0], [1], [0, 0, 1, 1], [], []>} : vector<8x128xf32>, vector<128x8xf32>, vector<8x8xf32> -> vector<8x8xf32>
    %c0_37 = arith.constant 0 : index
    %c0_38 = arith.constant 0 : index
    %c16 = arith.constant 16 : index
    %86 = vector.load %arg6[%c0_37, %c0_38, %c16] : memref<1x8x32xf32, #tpu.memory_space<vmem>>, vector<1x8x8xf32>
    %87 = vector.shape_cast %86 : vector<1x8x8xf32> to vector<8x8xf32>
    %88 = vector.shape_cast %85 : vector<8x8xf32> to vector<1x8x8xf32>
    tpu.vector_store %arg6[%c0_37, %c0_38, %c16], %88 {strides = array<i32>} : memref<1x8x32xf32, #tpu.memory_space<vmem>>, vector<1x8x8xf32>,
    %89 = arith.truncf %84 : vector<8x128xf32> to vector<8x128xbf16>
    %c0_39 = arith.constant 0 : index
    %c0_40 = arith.constant 0 : index
    %c256 = arith.constant 256 : index
    %90 = vector.load %arg7[%c0_39, %c0_40, %c256] : memref<1x8x512xbf16, #tpu.memory_space<vmem>>, vector<1x8x128xbf16>
    %91 = vector.shape_cast %90 : vector<1x8x128xbf16> to vector<8x128xbf16>
    %92 = vector.shape_cast %89 : vector<8x128xbf16> to vector<1x8x128xbf16>
    tpu.vector_store %arg7[%c0_39, %c0_40, %c256], %92 {strides = array<i32>} : memref<1x8x512xbf16, #tpu.memory_space<vmem>>, vector<1x8x128xbf16>,
    %93 = vector.extract_strided_slice %1 {offsets = [0, 24], sizes = [8, 8], strides = [1, 1]} : vector<8x32xf32> to vector<8x8xf32>
    %94 = vector.extract_strided_slice %3 {offsets = [0, 24], sizes = [128, 8], strides = [1, 1]} : vector<128x32xf32> to vector<128x8xf32>
    %95 = vector.extract_strided_slice %5 {offsets = [0, 24], sizes = [128, 8], strides = [1, 1]} : vector<128x32xf32> to vector<128x8xf32>
    %cst_41 = arith.constant dense<0.000000e+00> : vector<8x128xf32>
    %96 = tpu.matmul %93, %94, %cst_41 {dimension_numbers = #tpu.dot_dimension_numbers<[1], [1], [0], [0], [0, 0, 1, 0], [], []>} : vector<8x8xf32>, vector<128x8xf32>, vector<8x128xf32> -> vector<8x128xf32>
    %97 = tpu.iota {dimensions = array<i32: 1>} : vector<8x128xi32>
    %c8_i32_42 = arith.constant 8 : i32
    %98 = vector.broadcast %c8_i32_42 : i32 to vector<8x128xi32>
    %99 = arith.cmpi slt, %97, %98 : vector<8x128xi32>
    %cst_43 = arith.constant -1.000000e+30 : f32
    %100 = vector.broadcast %cst_43 : f32 to vector<8x128xf32>
    %101 = arith.select %99, %96, %100 : vector<8x128xi1>, vector<8x128xf32>
    %cst_44 = arith.constant 0.353553385 : f32
    %102 = vector.broadcast %cst_44 : f32 to vector<8x128xf32>
    %103 = arith.mulf %101, %102 : vector<8x128xf32>
    %cst_45 = arith.constant dense<0xFF800000> : vector<8xf32>
    %104 = vector.multi_reduction <maximumf>, %103, %cst_45 [1] : vector<8x128xf32> to vector<8xf32>
    %105 = vector.shape_cast %104 : vector<8xf32> to vector<8x1xf32>
    %106 = vector.broadcast %105 : vector<8x1xf32> to vector<8x128xf32>
    %107 = arith.subf %103, %106 : vector<8x128xf32>
    %108 = math.exp %107 : vector<8x128xf32>
    %cst_46 = arith.constant dense<0.000000e+00> : vector<8xf32>
    %109 = vector.multi_reduction <add>, %108, %cst_46 [1] : vector<8x128xf32> to vector<8xf32>
    %110 = vector.shape_cast %109 : vector<8xf32> to vector<8x1xf32>
    %111 = tpu.reciprocal %110 {approx = true} : vector<8x1xf32> -> vector<8x1xf32>
    %112 = vector.broadcast %111 : vector<8x1xf32> to vector<8x128xf32>
    %113 = arith.mulf %108, %112 : vector<8x128xf32>
    %cst_47 = arith.constant dense<0.000000e+00> : vector<8x8xf32>
    %114 = tpu.matmul %113, %95, %cst_47 {dimension_numbers = #tpu.dot_dimension_numbers<[1], [0], [0], [1], [0, 0, 1, 1], [], []>} : vector<8x128xf32>, vector<128x8xf32>, vector<8x8xf32> -> vector<8x8xf32>
    %c0_48 = arith.constant 0 : index
    %c0_49 = arith.constant 0 : index
    %c24 = arith.constant 24 : index
    %115 = vector.load %arg6[%c0_48, %c0_49, %c24] : memref<1x8x32xf32, #tpu.memory_space<vmem>>, vector<1x8x8xf32>
    %116 = vector.shape_cast %115 : vector<1x8x8xf32> to vector<8x8xf32>
    %117 = vector.shape_cast %114 : vector<8x8xf32> to vector<1x8x8xf32>
    tpu.vector_store %arg6[%c0_48, %c0_49, %c24], %117 {strides = array<i32>} : memref<1x8x32xf32, #tpu.memory_space<vmem>>, vector<1x8x8xf32>,
    %118 = arith.truncf %113 : vector<8x128xf32> to vector<8x128xbf16>
    %c0_50 = arith.constant 0 : index
    %c0_51 = arith.constant 0 : index
    %c384 = arith.constant 384 : index
    %119 = vector.load %arg7[%c0_50, %c0_51, %c384] : memref<1x8x512xbf16, #tpu.memory_space<vmem>>, vector<1x8x128xbf16>
    %120 = vector.shape_cast %119 : vector<1x8x128xbf16> to vector<8x128xbf16>
    %121 = vector.shape_cast %118 : vector<8x128xbf16> to vector<1x8x128xbf16>
    tpu.vector_store %arg7[%c0_50, %c0_51, %c384], %121 {strides = array<i32>} : memref<1x8x512xbf16, #tpu.memory_space<vmem>>, vector<1x8x128xbf16>,
    return
  }
  func.func @transform_0(%arg0: i32, %arg1: i32, %arg2: i32) -> (i32, i32, i32) {
    %c0_i32 = arith.constant 0 : i32
    return %arg0, %arg2, %arg1 : i32, i32, i32
  }
  func.func @transform_1(%arg0: i32, %arg1: i32, %arg2: i32) -> (i32, i32, i32) {
    %c0_i32 = arith.constant 0 : i32
    %c0_i32_0 = arith.constant 0 : i32
    return %arg0, %c0_i32, %arg1 : i32, i32, i32
  }
  func.func @transform_2(%arg0: i32, %arg1: i32, %arg2: i32) -> (i32, i32, i32) {
    %c0_i32 = arith.constant 0 : i32
    %c0_i32_0 = arith.constant 0 : i32
    return %arg0, %c0_i32, %arg1 : i32, i32, i32
  }
  func.func @transform_3(%arg0: i32, %arg1: i32, %arg2: i32) -> (i32, i32, i32) {
    %c0_i32 = arith.constant 0 : i32
    return %arg0, %arg2, %arg1 : i32, i32, i32
  }
  func.func @transform_4(%arg0: i32, %arg1: i32, %arg2: i32) -> (i32, i32, i32) {
    %c0_i32 = arith.constant 0 : i32
    return %arg0, %arg2, %arg1 : i32, i32, i32
  }
}

</mosaic_0001>

<llo_original>
// kernel: tpu_custom_call.1
$region0: #{tpu_custom_call.1}
  #allocation0 [shape = 'u32[]', space=smem, size = 0x4, offset = 0x4, fixed_abs, tag = 'smem constant byte address 0x4 - core index']
  #allocation1 [shape = 'u32[144,128]{1,0:T(1,128)}', space=vmem, size = 0x12000, scoped, tag = 'internal scratch']
  %s0 = inlined_call_operand.vmem [shape: f32[2,8,32], index: 0, kind: input, shape index: {}]
  %s1 = inlined_call_operand.vmem [shape: f32[2,128,32], index: 1, kind: input, shape index: {}]
  %s2 = inlined_call_operand.vmem [shape: f32[2,128,32], index: 2, kind: input, shape index: {}]
  %s3 = inlined_call_operand.hbm [shape: f32[2,8,32], index: 3, kind: output, shape index: {0}]
  %s4 = inlined_call_operand.hbm [shape: bf16[2,8,512], index: 4, kind: output, shape index: {1}]
  %5 = xla_tuple %s3, %s4
  %s6 = sld [smem:[#allocation0]]
  $region53: #{tpu_custom_call.1} parent=0
    _
  %s8 = ssub.s32 1, %s6
  %s9 = scalar_select 0, %s8, %s6
  $region1: #{tpu_custom_call.1} parent=0
    #allocation2 [shape = 'u8[8192]{0}', space=vmem, size = 0x2000, scoped, tag = 'output window, operand 0']
    #allocation3 [shape = 's32[2]{0}', space=sflag, size = 0x8, scoped, tag = 'scoped memory for tpu_custom_call.1']
    #allocation4 [shape = 'u8[16384]{0}', space=vmem, size = 0x4000, scoped, tag = 'output window, operand 1']
    #allocation5 [shape = 's32[2]{0}', space=sflag, size = 0x8, scoped, tag = 'scoped memory for tpu_custom_call.1']
    %10 = vsyncpa [#allocation3], 0
    %s11 = scalar_lea.sflag [#allocation3], 1
    %12 = vsyncpa %s11, 0
    %13 = vsyncpa [#allocation5], 0
    %s14 = scalar_lea.sflag [#allocation5], 1
    %15 = vsyncpa %s14, 0
    loop: start=0, step=1, limit=4
    $region2: #{tpu_custom_call.1} parent=1 // loop_pre_header
      _
    $region3: #{tpu_custom_call.1} parent=1 // loop_header
      %s17 = sphi 0, %s21
      %p18 = scmp.ge.s32.totalorder %s17, 4
      %s24 = sphi 0, %s43
      %s25 = sphi 0, %s39
      %s26 = sphi 0, %s35
      %s27 = sphi 0, %s24
      %s28 = sphi 0, %s25
      %s29 = sphi 0, %s26
      %s30 = sphi 0, %s27
      %s31 = sphi 0, %s28
      %s32 = sphi 0, %s29
      %s50 = sphi 0, %s52
      %s53 = sphi 0, %s50
      %s54 = sphi 0, %s53
      %s70 = sphi 0, %s54
      %s78 = sphi 0, %s80
      %s81 = sphi 0, %s78
      %s82 = sphi 0, %s81
      %s98 = sphi 0, %s82
      %s106 = sphi 0, %s108
      %s109 = sphi 0, %s106
      %s110 = sphi 0, %s109
      %s126 = sphi 0, %s110
      %s136 = sphi 0, %s138
      %s139 = sphi 0, %s136
      %s140 = sphi 0, %s139
      %s156 = sphi 0, %s140
      %s166 = sphi 0, %s168
      %s169 = sphi 0, %s166
      %s170 = sphi 0, %s169
      %s186 = sphi 0, %s170
    $region4: #{tpu_custom_call.1} parent=1 // loop_header_branch
      %20 = sbr.rel (%p18) target = $region8
    $region5: #{tpu_custom_call.1} parent=1 // loop_body
      %s22 = ssub.s32 %s17, 1
      %s23 = ssub.s32 %s17, 2
      %s33 = sadd.s32 1, %s26
      %p34 = scmp.ge.s32.totalorder %s33, 1
      %s35 = scalar_select %p34, 0, %s33
      %s36 = sadd.s32 1, %s25
      %s37 = scalar_select %p34, %s36, %s25
      %p38 = scmp.ge.s32.totalorder %s37, 1
      %s39 = scalar_select %p38, 0, %s37
      %s40 = sadd.s32 1, %s24
      %s41 = scalar_select %p38, %s40, %s24
      %p42 = scmp.ge.s32.totalorder %s41, 2
      %s43 = scalar_select %p42, 0, %s41
      %s44 = ssub.s32 %s24, %s43
      %s45 = ssub.s32 %s26, %s35
      %s46 = sor.u32 %s44, %s45
      %s47 = ssub.s32 %s25, %s39
      %s48 = sor.u32 %s46, %s47
      %p49 = scmp.eq.s32.totalorder %s48, 0
      %s51 = sadd.s32 %s50, 1
      %s52 = scalar_select %p49, %s50, %s51
      %p55 = pneg %p49
      %p56 = scmp.eq.s32.totalorder %s17, 1
      %p57 = por %p55, %p56
      %p58 = scmp.ne.s32.totalorder %s50, %s53
      %p59 = scmp.eq.s32.totalorder %s17, 0
      %p60 = por %p58, %p59
      %p61 = scmp.ne.s32.totalorder %s50, %s53
      %p62 = scmp.eq.s32.totalorder %s22, 1
      %p63 = por %p61, %p62
      %p64 = scmp.ne.s32.totalorder %s53, %s54
      %p65 = scmp.eq.s32.totalorder %s22, 0
      %p66 = por %p64, %p65
      %p67 = scmp.ne.s32.totalorder %s53, %s54
      %p68 = scmp.eq.s32.totalorder %s23, 1
      %p69 = por %p67, %p68
      %p71 = scmp.ne.s32.totalorder %s54, %s70
      %p72 = scmp.eq.s32.totalorder %s23, 0
      %p73 = por %p71, %p72
      %s74 = ssub.s32 %s24, %s43
      %s75 = ssub.s32 %s25, %s39
      %s76 = sor.u32 %s74, %s75
      %p77 = scmp.eq.s32.totalorder %s76, 0
      %s79 = sadd.s32 %s78, 1
      %s80 = scalar_select %p77, %s78, %s79
      %p83 = pneg %p77
      %p84 = scmp.eq.s32.totalorder %s17, 1
      %p85 = por %p83, %p84
      %p86 = scmp.ne.s32.totalorder %s78, %s81
      %p87 = scmp.eq.s32.totalorder %s17, 0
      %p88 = por %p86, %p87
      %p89 = scmp.ne.s32.totalorder %s78, %s81
      %p90 = scmp.eq.s32.totalorder %s22, 1
      %p91 = por %p89, %p90
      %p92 = scmp.ne.s32.totalorder %s81, %s82
      %p93 = scmp.eq.s32.totalorder %s22, 0
      %p94 = por %p92, %p93
      %p95 = scmp.ne.s32.totalorder %s81, %s82
      %p96 = scmp.eq.s32.totalorder %s23, 1
      %p97 = por %p95, %p96
      %p99 = scmp.ne.s32.totalorder %s82, %s98
      %p100 = scmp.eq.s32.totalorder %s23, 0
      %p101 = por %p99, %p100
      %s102 = ssub.s32 %s24, %s43
      %s103 = ssub.s32 %s25, %s39
      %s104 = sor.u32 %s102, %s103
      %p105 = scmp.eq.s32.totalorder %s104, 0
      %s107 = sadd.s32 %s106, 1
      %s108 = scalar_select %p105, %s106, %s107
      %p111 = pneg %p105
      %p112 = scmp.eq.s32.totalorder %s17, 1
      %p113 = por %p111, %p112
      %p114 = scmp.ne.s32.totalorder %s106, %s109
      %p115 = scmp.eq.s32.totalorder %s17, 0
      %p116 = por %p114, %p115
      %p117 = scmp.ne.s32.totalorder %s106, %s109
      %p118 = scmp.eq.s32.totalorder %s22, 1
      %p119 = por %p117, %p118
      %p120 = scmp.ne.s32.totalorder %s109, %s110
      %p121 = scmp.eq.s32.totalorder %s22, 0
      %p122 = por %p120, %p121
      %p123 = scmp.ne.s32.totalorder %s109, %s110
      %p124 = scmp.eq.s32.totalorder %s23, 1
      %p125 = por %p123, %p124
      %p127 = scmp.ne.s32.totalorder %s110, %s126
      %p128 = scmp.eq.s32.totalorder %s23, 0
      %p129 = por %p127, %p128
      %s130 = ssub.s32 %s24, %s43
      %s131 = ssub.s32 %s26, %s35
      %s132 = sor.u32 %s130, %s131
      %s133 = ssub.s32 %s25, %s39
      %s134 = sor.u32 %s132, %s133
      %p135 = scmp.eq.s32.totalorder %s134, 0
      %s137 = sadd.s32 %s136, 1
      %s138 = scalar_select %p135, %s136, %s137
      %p141 = pneg %p135
      %p142 = scmp.eq.s32.totalorder %s17, 1
      %p143 = por %p141, %p142
      %p144 = scmp.ne.s32.totalorder %s136, %s139
      %p145 = scmp.eq.s32.totalorder %s17, 0
      %p146 = por %p144, %p145
      %p147 = scmp.ne.s32.totalorder %s136, %s139
      %p148 = scmp.eq.s32.totalorder %s22, 1
      %p149 = por %p147, %p148
      %p150 = scmp.ne.s32.totalorder %s139, %s140
      %p151 = scmp.eq.s32.totalorder %s22, 0
      %p152 = por %p150, %p151
      %p153 = scmp.ne.s32.totalorder %s139, %s140
      %p154 = scmp.eq.s32.totalorder %s23, 1
      %p155 = por %p153, %p154
      %p157 = scmp.ne.s32.totalorder %s140, %s156
      %p158 = scmp.eq.s32.totalorder %s23, 0
      %p159 = por %p157, %p158
      %s160 = ssub.s32 %s24, %s43
      %s161 = ssub.s32 %s26, %s35
      %s162 = sor.u32 %s160, %s161
      %s163 = ssub.s32 %s25, %s39
      %s164 = sor.u32 %s162, %s163
      %p165 = scmp.eq.s32.totalorder %s164, 0
      %s167 = sadd.s32 %s166, 1
      %s168 = scalar_select %p165, %s166, %s167
      %p171 = pneg %p165
      %p172 = scmp.eq.s32.totalorder %s17, 1
      %p173 = por %p171, %p172
      %p174 = scmp.ne.s32.totalorder %s166, %s169
      %p175 = scmp.eq.s32.totalorder %s17, 0
      %p176 = por %p174, %p175
      %p177 = scmp.ne.s32.totalorder %s166, %s169
      %p178 = scmp.eq.s32.totalorder %s22, 1
      %p179 = por %p177, %p178
      %p180 = scmp.ne.s32.totalorder %s169, %s170
      %p181 = scmp.eq.s32.totalorder %s22, 0
      %p182 = por %p180, %p181
      %p183 = scmp.ne.s32.totalorder %s169, %s170
      %p184 = scmp.eq.s32.totalorder %s23, 1
      %p185 = por %p183, %p184
      %p187 = scmp.ne.s32.totalorder %s170, %s186
      %p188 = scmp.eq.s32.totalorder %s23, 0
      %p189 = por %p187, %p188
      %p190 = scmp.le.s32.totalorder 1, %s17
      %p191 = scmp.lt.s32.totalorder %s17, 3
      %p192 = pnand %p190, %p191
      %p193 = pneg %p192
      // Predicated region
      $region9: #{tpu_custom_call.1} parent=5 // pred_check
        _
      $region10: #{tpu_custom_call.1} parent=5 // pred_check_branch
        %195 = sbr.rel (%p192) target = $region12
      $region11: #{tpu_custom_call.1} parent=5 // pred_region
        %s196 = ssub.s32 %s17, 1
      $region12: #{tpu_custom_call.1} parent=5 // pred_fallthru
        _
      %p197 = scmp.lt.s32.totalorder %s17, 2
      // Predicated region
      $region13: #{tpu_custom_call.1} parent=5 // pred_check
        %p198 = pneg %p197
      $region14: #{tpu_custom_call.1} parent=5 // pred_check_branch
        %200 = sbr.rel (%p198) target = $region16
      $region15: #{tpu_custom_call.1} parent=5 // pred_region
        // Predicated region
        $region17: #{tpu_custom_call.1} parent=15 // pred_check
          %p201 = pneg %p60
        $region18: #{tpu_custom_call.1} parent=15 // pred_check_branch
          %203 = sbr.rel (%p201) target = $region20
        $region19: #{tpu_custom_call.1} parent=15 // pred_region
          %p204 = scmp.lt.s32.totalorder %s24, 1
          %s205 = scalar_select %p204, %s24, 1
          %p206 = scmp.lt.s32.totalorder %s26, 0
          %s207 = scalar_select %p206, %s26, 0
          %p208 = scmp.lt.s32.totalorder %s25, 0
          %s209 = scalar_select %p208, %s25, 0
          %s210 = sadd.s32 %s209, %s207
          %s211 = sadd.s32 %s210, %s205
          %s212 = smul.addr %s211, 8
          %s213 = scalar_lea.vmem %s0, %s212
        $region20: #{tpu_custom_call.1} parent=15 // pred_fallthru
          _
        // Predicated region
        $region21: #{tpu_custom_call.1} parent=15 // pred_check
          %p214 = pneg %p88
        $region22: #{tpu_custom_call.1} parent=15 // pred_check_branch
          %216 = sbr.rel (%p214) target = $region24
        $region23: #{tpu_custom_call.1} parent=15 // pred_region
          %p217 = scmp.lt.s32.totalorder %s24, 1
          %s218 = scalar_select %p217, %s24, 1
          %p219 = scmp.lt.s32.totalorder %s25, 0
          %s220 = scalar_select %p219, %s25, 0
          %s221 = smul.addr %s218, 16
          %s222 = sadd.s32 %s220, %s221
          %s223 = smul.addr %s222, 8
          %s224 = scalar_lea.vmem %s1, %s223
        $region24: #{tpu_custom_call.1} parent=15 // pred_fallthru
          _
        // Predicated region
        $region25: #{tpu_custom_call.1} parent=15 // pred_check
          %p225 = pneg %p116
        $region26: #{tpu_custom_call.1} parent=15 // pred_check_branch
          %227 = sbr.rel (%p225) target = $region28
        $region27: #{tpu_custom_call.1} parent=15 // pred_region
          %p228 = scmp.lt.s32.totalorder %s24, 1
          %s229 = scalar_select %p228, %s24, 1
          %p230 = scmp.lt.s32.totalorder %s25, 0
          %s231 = scalar_select %p230, %s25, 0
          %s232 = smul.addr %s229, 16
          %s233 = sadd.s32 %s231, %s232
          %s234 = smul.addr %s233, 8
          %s235 = scalar_lea.vmem %s2, %s234
        $region28: #{tpu_custom_call.1} parent=15 // pred_fallthru
          _
      $region16: #{tpu_custom_call.1} parent=5 // pred_fallthru
        _
      %p236 = scmp.le.s32.totalorder 1, %s17
      %p237 = scmp.lt.s32.totalorder %s17, 3
      %p238 = pnand %p236, %p237
      %p239 = pneg %p238
      // Predicated region
      $region29: #{tpu_custom_call.1} parent=5 // pred_check
        _
      $region30: #{tpu_custom_call.1} parent=5 // pred_check_branch
        %241 = sbr.rel (%p238) target = $region32
      $region31: #{tpu_custom_call.1} parent=5 // pred_region
        %s242 = ssub.s32 %s17, 1
        %p243 = scmp.lt.s32.totalorder %s27, 1
        %s244 = scalar_select %p243, %s27, 1
        %p245 = scmp.lt.s32.totalorder %s29, 0
        %s246 = scalar_select %p245, %s29, 0
        %p247 = scmp.lt.s32.totalorder %s28, 0
        %s248 = scalar_select %p247, %s28, 0
        %s249 = sadd.s32 %s248, %s246
        %s250 = sadd.s32 %s249, %s244
        %s251 = smul.addr %s250, 8
        %s252 = scalar_lea.vmem %s0, %s251
        %p253 = pneg %p66
        %p254 = pneg %p63
        %p255 = scmp.lt.s32.totalorder %s27, 1
        %s256 = scalar_select %p255, %s27, 1
        %p257 = scmp.lt.s32.totalorder %s28, 0
        %s258 = scalar_select %p257, %s28, 0
        %s259 = smul.addr %s256, 16
        %s260 = sadd.s32 %s258, %s259
        %s261 = smul.addr %s260, 8
        %s262 = scalar_lea.vmem %s1, %s261
        %p263 = pneg %p94
        %p264 = pneg %p91
        %p265 = scmp.lt.s32.totalorder %s27, 1
        %s266 = scalar_select %p265, %s27, 1
        %p267 = scmp.lt.s32.totalorder %s28, 0
        %s268 = scalar_select %p267, %s28, 0
        %s269 = smul.addr %s266, 16
        %s270 = sadd.s32 %s268, %s269
        %s271 = smul.addr %s270, 8
        %s272 = scalar_lea.vmem %s2, %s271
        %p273 = pneg %p122
        %p274 = pneg %p119
        %p275 = pneg %p152
        %p276 = pneg %p149
        %s277 = sand.u32 %s139, 1
        %s278 = scalar_lea.sflag [#allocation3], %s277
        %s279 = sand.u32 %s139, 1
        %s280 = smul.addr %s279, 8
        %s281 = scalar_lea.vmem [#allocation2], %s280
        %p282 = pneg %p182
        %p283 = pneg %p179
        %s284 = sand.u32 %s169, 1
        %s285 = scalar_lea.sflag [#allocation5], %s284
        %s286 = sand.u32 %s169, 1
        %s287 = smul.addr %s286, 16
        %s288 = scalar_lea.vmem [#allocation4], %s287
        %p289 = scmp.lt.s32.totalorder %s27, 1
        %s290 = scalar_select %p289, %s27, 1
        %p291 = scmp.lt.s32.totalorder %s29, 0
        %s292 = scalar_select %p291, %s29, 0
        %p293 = scmp.lt.s32.totalorder %s28, 0
        %s294 = scalar_select %p293, %s28, 0
        %s295 = sadd.s32 %s294, %s292
        %s296 = sadd.s32 %s295, %s290
        %s297 = smul.addr %s296, 8
        %s298 = scalar_lea.vmem %s0, %s297
        %p299 = scmp.lt.s32.totalorder %s27, 1
        %s300 = scalar_select %p299, %s27, 1
        %p301 = scmp.lt.s32.totalorder %s28, 0
        %s302 = scalar_select %p301, %s28, 0
        %s303 = smul.addr %s300, 16
        %s304 = sadd.s32 %s302, %s303
        %s305 = smul.addr %s304, 8
        %s306 = scalar_lea.vmem %s1, %s305
        %p307 = scmp.lt.s32.totalorder %s27, 1
        %s308 = scalar_select %p307, %s27, 1
        %p309 = scmp.lt.s32.totalorder %s28, 0
        %s310 = scalar_select %p309, %s28, 0
        %s311 = smul.addr %s308, 16
        %s312 = sadd.s32 %s310, %s311
        %s313 = smul.addr %s312, 8
        %s314 = scalar_lea.vmem %s2, %s313
        %s315 = smul.u32 4, %s28
        %v316 = vld [vmem:[%s298] sm:$0xff]
        %v317 = vld [vmem:[%s306] sm:$0xff]
        %v318 = vld [vmem:[%s306 + $0x8] sm:$0xff]
        %v319 = vld [vmem:[%s306 + $0x10] sm:$0xff]
        %v320 = vld [vmem:[%s306 + $0x18] sm:$0xff]
        %v321 = vld [vmem:[%s306 + $0x20] sm:$0xff]
        %v322 = vld [vmem:[%s306 + $0x28] sm:$0xff]
        %v323 = vld [vmem:[%s306 + $0x30] sm:$0xff]
        %v324 = vld [vmem:[%s306 + $0x38] sm:$0xff]
        %v325 = vld [vmem:[%s306 + $0x40] sm:$0xff]
        %v326 = vld [vmem:[%s306 + $0x48] sm:$0xff]
        %v327 = vld [vmem:[%s306 + $0x50] sm:$0xff]
        %v328 = vld [vmem:[%s306 + $0x58] sm:$0xff]
        %v329 = vld [vmem:[%s306 + $0x60] sm:$0xff]
        %v330 = vld [vmem:[%s306 + $0x68] sm:$0xff]
        %v331 = vld [vmem:[%s306 + $0x70] sm:$0xff]
        %v332 = vld [vmem:[%s306 + $0x78] sm:$0xff]
        %v333 = vld [vmem:[%s314] sm:$0xff]
        %v334 = vld [vmem:[%s314 + $0x8] sm:$0xff]
        %v335 = vld [vmem:[%s314 + $0x10] sm:$0xff]
        %v336 = vld [vmem:[%s314 + $0x18] sm:$0xff]
        %v337 = vld [vmem:[%s314 + $0x20] sm:$0xff]
        %v338 = vld [vmem:[%s314 + $0x28] sm:$0xff]
        %v339 = vld [vmem:[%s314 + $0x30] sm:$0xff]
        %v340 = vld [vmem:[%s314 + $0x38] sm:$0xff]
        %v341 = vld [vmem:[%s314 + $0x40] sm:$0xff]
        %v342 = vld [vmem:[%s314 + $0x48] sm:$0xff]
        %v343 = vld [vmem:[%s314 + $0x50] sm:$0xff]
        %v344 = vld [vmem:[%s314 + $0x58] sm:$0xff]
        %v345 = vld [vmem:[%s314 + $0x60] sm:$0xff]
        %v346 = vld [vmem:[%s314 + $0x68] sm:$0xff]
        %v347 = vld [vmem:[%s314 + $0x70] sm:$0xff]
        %v348 = vld [vmem:[%s314 + $0x78] sm:$0xff]
        %vm349 = vcmask 64512
        %v351 = vsel %vm349, %v316, 0
        %v354 = vsel %vm349, %v317, 0
        %v357 = vsel %vm349, %v318, 0
        %v360 = vsel %vm349, %v319, 0
        %v363 = vsel %vm349, %v320, 0
        %v366 = vsel %vm349, %v321, 0
        %v369 = vsel %vm349, %v322, 0
        %v372 = vsel %vm349, %v323, 0
        %v375 = vsel %vm349, %v324, 0
        %v378 = vsel %vm349, %v325, 0
        %v381 = vsel %vm349, %v326, 0
        %v384 = vsel %vm349, %v327, 0
        %v387 = vsel %vm349, %v328, 0
        %v390 = vsel %vm349, %v329, 0
        %v393 = vsel %vm349, %v330, 0
        %v396 = vsel %vm349, %v331, 0
        %v399 = vsel %vm349, %v332, 0
        %401 = vmatprep.subr.mxu0 0.0
        %402 = vmatpush1.xpose.msra.mxu0 %v354
        %403 = vmatprep.subr.mxu0 0.0
        %404 = vmatpush1.xpose.msra.mxu0 %v357
        %405 = vmatprep.subr.mxu0 0.0
        %406 = vmatpush1.xpose.msra.mxu0 %v360
        %407 = vmatprep.subr.mxu0 0.0
        %408 = vmatpush1.xpose.msra.mxu0 %v363
        %409 = vmatprep.subr.mxu0 0.0
        %410 = vmatpush1.xpose.msra.mxu0 %v366
        %411 = vmatprep.subr.mxu0 0.0
        %412 = vmatpush1.xpose.msra.mxu0 %v369
        %413 = vmatprep.subr.mxu0 0.0
        %414 = vmatpush1.xpose.msra.mxu0 %v372
        %415 = vmatprep.subr.mxu0 0.0
        %416 = vmatpush1.xpose.msra.mxu0 %v375
        %417 = vmatprep.subr.mxu0 0.0
        %418 = vmatpush1.xpose.msra.mxu0 %v378
        %419 = vmatprep.subr.mxu0 0.0
        %420 = vmatpush1.xpose.msra.mxu0 %v381
        %421 = vmatprep.subr.mxu0 0.0
        %422 = vmatpush1.xpose.msra.mxu0 %v384
        %423 = vmatprep.subr.mxu0 0.0
        %424 = vmatpush1.xpose.msra.mxu0 %v387
        %425 = vmatprep.subr.mxu0 0.0
        %426 = vmatpush1.xpose.msra.mxu0 %v390
        %427 = vmatprep.subr.mxu0 0.0
        %428 = vmatpush1.xpose.msra.mxu0 %v393
        %429 = vmatprep.subr.mxu0 0.0
        %430 = vmatpush1.xpose.msra.mxu0 %v396
        %431 = vmatprep.subr.mxu0 0.0
        %432 = vmatpush1.xpose.msra.mxu0 %v399
        %433 = vmatprep.subr.mxu0 0.0
        %434 = vmatpush1.xpose.msra.mxu0 0.0
        %435 = vmatprep.subr.mxu0 0.0
        %436 = vmatpush1.xpose.msra.mxu0 0.0
        %437 = vmatprep.subr.mxu0 0.0
        %438 = vmatpush1.xpose.msra.mxu0 0.0
        %439 = vmatprep.subr.mxu0 0.0
        %440 = vmatpush1.xpose.msra.mxu0 0.0
        %441 = vmatprep.subr.mxu0 0.0
        %442 = vmatpush1.xpose.msra.mxu0 0.0
        %443 = vmatprep.subr.mxu0 0.0
        %444 = vmatpush1.xpose.msra.mxu0 0.0
        %445 = vmatprep.subr.mxu0 0.0
        %446 = vmatpush1.xpose.msra.mxu0 0.0
        %447 = vmatprep.subr.mxu0 0.0
        %448 = vmatpush1.xpose.msra.mxu0 0.0
        %449 = vmatprep.subr.mxu0 0.0
        %450 = vmatpush1.xpose.msra.mxu0 0.0
        %451 = vmatprep.subr.mxu0 0.0
        %452 = vmatpush1.xpose.msra.mxu0 0.0
        %453 = vmatprep.subr.mxu0 0.0
        %454 = vmatpush1.xpose.msra.mxu0 0.0
        %455 = vmatprep.subr.mxu0 0.0
        %456 = vmatpush1.xpose.msra.mxu0 0.0
        %457 = vmatprep.subr.mxu0 0.0
        %458 = vmatpush1.xpose.msra.mxu0 0.0
        %459 = vmatprep.subr.mxu0 0.0
        %460 = vmatpush1.xpose.msra.mxu0 0.0
        %461 = vmatprep.subr.mxu0 0.0
        %462 = vmatpush1.xpose.msra.mxu0 0.0
        %463 = vmatprep.subr.mxu0 0.0
        %464 = vmatpush1.xpose.msra.mxu0 0.0
        %465 = vmatprep.mubr.f32.mxu0 0.0
        %466 = vmatmul.mubr.f32.gmra.mrb[0].mxu0 %v351
        %v467 = vpop.f32.mrb[0].mxu0
        %v468 = vadd.f32 0.0, %v467
        %v469 = vpop.f32.mrb[0].mxu0
        %470 = vdwg.mxu0
        %v471 = vlaneseq
        %v472 = vand.u32 %v471, 127
        %vm473 = vcmp.lt.s32.totalorder %v472, 8
        %v474 = vsel %vm473, %v468, -1e+30
        %v475 = vmul.f32 %v474, 0.35355338
        %476 = vmax.xlane.f32.xlu0 %v475
        %v477 = vpop.xlane.xlu0 %476
        %v478 = vsub.f32 %v475, %v477
        %v479 = vmul.f32 %v478, 1.442695
        %v480 = vpow.pop %v479
        %481 = vadd.xlane.f32.xlu0 %v480
        %v482 = vpop.xlane.xlu0 %481
        %v483 = vrcp.pop %v482
        %v484 = vmul.f32 %v480, %v483
        %485 = vmatprep.subr.mxu0 0.0
        %486 = vmatpush1.msra.mxu0 %v333
        %487 = vmatprep.subr.mxu0 0.0
        %488 = vmatpush1.msra.mxu0 %v334
        %489 = vmatprep.subr.mxu0 0.0
        %490 = vmatpush1.msra.mxu0 %v335
        %491 = vmatprep.subr.mxu0 0.0
        %492 = vmatpush1.msra.mxu0 %v336
        %493 = vmatprep.subr.mxu0 0.0
        %494 = vmatpush1.msra.mxu0 %v337
        %495 = vmatprep.subr.mxu0 0.0
        %496 = vmatpush1.msra.mxu0 %v338
        %497 = vmatprep.subr.mxu0 0.0
        %498 = vmatpush1.msra.mxu0 %v339
        %499 = vmatprep.subr.mxu0 0.0
        %500 = vmatpush1.msra.mxu0 %v340
        %501 = vmatprep.subr.mxu0 0.0
        %502 = vmatpush1.msra.mxu0 %v341
        %503 = vmatprep.subr.mxu0 0.0
        %504 = vmatpush1.msra.mxu0 %v342
        %505 = vmatprep.subr.mxu0 0.0
        %506 = vmatpush1.msra.mxu0 %v343
        %507 = vmatprep.subr.mxu0 0.0
        %508 = vmatpush1.msra.mxu0 %v344
        %509 = vmatprep.subr.mxu0 0.0
        %510 = vmatpush1.msra.mxu0 %v345
        %511 = vmatprep.subr.mxu0 0.0
        %512 = vmatpush1.msra.mxu0 %v346
        %513 = vmatprep.subr.mxu0 0.0
        %514 = vmatpush1.msra.mxu0 %v347
        %515 = vmatprep.subr.mxu0 0.0
        %516 = vmatpush1.msra.mxu0 %v348
        %517 = vmatprep.subr.mxu0 0.0
        %518 = vmatpush1.msra.mxu0 0.0
        %519 = vmatprep.subr.mxu0 0.0
        %520 = vmatpush1.msra.mxu0 0.0
        %521 = vmatprep.subr.mxu0 0.0
        %522 = vmatpush1.msra.mxu0 0.0
        %523 = vmatprep.subr.mxu0 0.0
        %524 = vmatpush1.msra.mxu0 0.0
        %525 = vmatprep.subr.mxu0 0.0
        %526 = vmatpush1.msra.mxu0 0.0
        %527 = vmatprep.subr.mxu0 0.0
        %528 = vmatpush1.msra.mxu0 0.0
        %529 = vmatprep.subr.mxu0 0.0
        %530 = vmatpush1.msra.mxu0 0.0
        %531 = vmatprep.subr.mxu0 0.0
        %532 = vmatpush1.msra.mxu0 0.0
        %533 = vmatprep.subr.mxu0 0.0
        %534 = vmatpush1.msra.mxu0 0.0
        %535 = vmatprep.subr.mxu0 0.0
        %536 = vmatpush1.msra.mxu0 0.0
        %537 = vmatprep.subr.mxu0 0.0
        %538 = vmatpush1.msra.mxu0 0.0
        %539 = vmatprep.subr.mxu0 0.0
        %540 = vmatpush1.msra.mxu0 0.0
        %541 = vmatprep.subr.mxu0 0.0
        %542 = vmatpush1.msra.mxu0 0.0
        %543 = vmatprep.subr.mxu0 0.0
        %544 = vmatpush1.msra.mxu0 0.0
        %545 = vmatprep.subr.mxu0 0.0
        %546 = vmatpush1.msra.mxu0 0.0
        %547 = vmatprep.subr.mxu0 0.0
        %548 = vmatpush1.msra.mxu0 0.0
        %549 = vmatprep.mubr.f32.mxu0 0.0
        %550 = vmatmul.mubr.f32.gmra.mrb[0].mxu0 %v484
        %v551 = vpop.f32.mrb[0].mxu0
        %v552 = vadd.f32 0.0, %v551
        %v553 = vpop.f32.mrb[0].mxu0
        %554 = vdwg.mxu0
        %555 = vst.msk [vmem:[%s281] sm:$0xff] %vm349, %v552
        %v556 = vpack.c.bf16 %v484, %v484
        %557 = vst [vmem:[%s288] sm:$0xf] %v556
        %558 = vrot.lane.b32.xlu0 %v316, 120
        %v559 = vpop.permute.xlu0 %558
        %560 = vrot.lane.b32.xlu0 %v317, 120
        %v561 = vpop.permute.xlu0 %560
        %562 = vrot.lane.b32.xlu0 %v318, 120
        %v563 = vpop.permute.xlu0 %562
        %564 = vrot.lane.b32.xlu0 %v319, 120
        %v565 = vpop.permute.xlu0 %564
        %566 = vrot.lane.b32.xlu0 %v320, 120
        %v567 = vpop.permute.xlu0 %566
        %568 = vrot.lane.b32.xlu0 %v321, 120
        %v569 = vpop.permute.xlu0 %568
        %570 = vrot.lane.b32.xlu0 %v322, 120
        %v571 = vpop.permute.xlu0 %570
        %572 = vrot.lane.b32.xlu0 %v323, 120
        %v573 = vpop.permute.xlu0 %572
        %574 = vrot.lane.b32.xlu0 %v324, 120
        %v575 = vpop.permute.xlu0 %574
        %576 = vrot.lane.b32.xlu0 %v325, 120
        %v577 = vpop.permute.xlu0 %576
        %578 = vrot.lane.b32.xlu0 %v326, 120
        %v579 = vpop.permute.xlu0 %578
        %580 = vrot.lane.b32.xlu0 %v327, 120
        %v581 = vpop.permute.xlu0 %580
        %582 = vrot.lane.b32.xlu0 %v328, 120
        %v583 = vpop.permute.xlu0 %582
        %584 = vrot.lane.b32.xlu0 %v329, 120
        %v585 = vpop.permute.xlu0 %584
        %586 = vrot.lane.b32.xlu0 %v330, 120
        %v587 = vpop.permute.xlu0 %586
        %588 = vrot.lane.b32.xlu0 %v331, 120
        %v589 = vpop.permute.xlu0 %588
        %590 = vrot.lane.b32.xlu0 %v332, 120
        %v591 = vpop.permute.xlu0 %590
        %v592 = vsel %vm349, %v559, 0
        %v594 = vsel %vm349, %v561, 0
        %v596 = vsel %vm349, %v563, 0
        %v598 = vsel %vm349, %v565, 0
        %v600 = vsel %vm349, %v567, 0
        %v602 = vsel %vm349, %v569, 0
        %v604 = vsel %vm349, %v571, 0
        %v606 = vsel %vm349, %v573, 0
        %v608 = vsel %vm349, %v575, 0
        %v610 = vsel %vm349, %v577, 0
        %v612 = vsel %vm349, %v579, 0
        %v614 = vsel %vm349, %v581, 0
        %v616 = vsel %vm349, %v583, 0
        %v618 = vsel %vm349, %v585, 0
        %v620 = vsel %vm349, %v587, 0
        %v622 = vsel %vm349, %v589, 0
        %v624 = vsel %vm349, %v591, 0
        %626 = vmatprep.subr.mxu0 0.0
        %627 = vmatpush1.xpose.msra.mxu0 %v594
        %628 = vmatprep.subr.mxu0 0.0
        %629 = vmatpush1.xpose.msra.mxu0 %v596
        %630 = vmatprep.subr.mxu0 0.0
        %631 = vmatpush1.xpose.msra.mxu0 %v598
        %632 = vmatprep.subr.mxu0 0.0
        %633 = vmatpush1.xpose.msra.mxu0 %v600
        %634 = vmatprep.subr.mxu0 0.0
        %635 = vmatpush1.xpose.msra.mxu0 %v602
        %636 = vmatprep.subr.mxu0 0.0
        %637 = vmatpush1.xpose.msra.mxu0 %v604
        %638 = vmatprep.subr.mxu0 0.0
        %639 = vmatpush1.xpose.msra.mxu0 %v606
        %640 = vmatprep.subr.mxu0 0.0
        %641 = vmatpush1.xpose.msra.mxu0 %v608
        %642 = vmatprep.subr.mxu0 0.0
        %643 = vmatpush1.xpose.msra.mxu0 %v610
        %644 = vmatprep.subr.mxu0 0.0
        %645 = vmatpush1.xpose.msra.mxu0 %v612
        %646 = vmatprep.subr.mxu0 0.0
        %647 = vmatpush1.xpose.msra.mxu0 %v614
        %648 = vmatprep.subr.mxu0 0.0
        %649 = vmatpush1.xpose.msra.mxu0 %v616
        %650 = vmatprep.subr.mxu0 0.0
        %651 = vmatpush1.xpose.msra.mxu0 %v618
        %652 = vmatprep.subr.mxu0 0.0
        %653 = vmatpush1.xpose.msra.mxu0 %v620
        %654 = vmatprep.subr.mxu0 0.0
        %655 = vmatpush1.xpose.msra.mxu0 %v622
        %656 = vmatprep.subr.mxu0 0.0
        %657 = vmatpush1.xpose.msra.mxu0 %v624
        %658 = vmatprep.subr.mxu0 0.0
        %659 = vmatpush1.xpose.msra.mxu0 0.0
        %660 = vmatprep.subr.mxu0 0.0
        %661 = vmatpush1.xpose.msra.mxu0 0.0
        %662 = vmatprep.subr.mxu0 0.0
        %663 = vmatpush1.xpose.msra.mxu0 0.0
        %664 = vmatprep.subr.mxu0 0.0
        %665 = vmatpush1.xpose.msra.mxu0 0.0
        %666 = vmatprep.subr.mxu0 0.0
        %667 = vmatpush1.xpose.msra.mxu0 0.0
        %668 = vmatprep.subr.mxu0 0.0
        %669 = vmatpush1.xpose.msra.mxu0 0.0
        %670 = vmatprep.subr.mxu0 0.0
        %671 = vmatpush1.xpose.msra.mxu0 0.0
        %672 = vmatprep.subr.mxu0 0.0
        %673 = vmatpush1.xpose.msra.mxu0 0.0
        %674 = vmatprep.subr.mxu0 0.0
        %675 = vmatpush1.xpose.msra.mxu0 0.0
        %676 = vmatprep.subr.mxu0 0.0
        %677 = vmatpush1.xpose.msra.mxu0 0.0
        %678 = vmatprep.subr.mxu0 0.0
        %679 = vmatpush1.xpose.msra.mxu0 0.0
        %680 = vmatprep.subr.mxu0 0.0
        %681 = vmatpush1.xpose.msra.mxu0 0.0
        %682 = vmatprep.subr.mxu0 0.0
        %683 = vmatpush1.xpose.msra.mxu0 0.0
        %684 = vmatprep.subr.mxu0 0.0
        %685 = vmatpush1.xpose.msra.mxu0 0.0
        %686 = vmatprep.subr.mxu0 0.0
        %687 = vmatpush1.xpose.msra.mxu0 0.0
        %688 = vmatprep.subr.mxu0 0.0
        %689 = vmatpush1.xpose.msra.mxu0 0.0
        %690 = vmatprep.mubr.f32.mxu0 0.0
        %691 = vmatmul.mubr.f32.gmra.mrb[0].mxu0 %v592
        %v692 = vpop.f32.mrb[0].mxu0
        %v693 = vadd.f32 0.0, %v692
        %v694 = vpop.f32.mrb[0].mxu0
        %695 = vdwg.mxu0
        %v696 = vsel %vm473, %v693, -1e+30
        %v697 = vmul.f32 %v696, 0.35355338
        %698 = vmax.xlane.f32.xlu0 %v697
        %v699 = vpop.xlane.xlu0 %698
        %v700 = vsub.f32 %v697, %v699
        %v701 = vmul.f32 %v700, 1.442695
        %v702 = vpow.pop %v701
        %703 = vadd.xlane.f32.xlu0 %v702
        %v704 = vpop.xlane.xlu0 %703
        %v705 = vrcp.pop %v704
        %v706 = vmul.f32 %v702, %v705
        %723 = vrot.lane.b32.xlu0 %v333, 120
        %v724 = vpop.permute.xlu0 %723
        %725 = vrot.lane.b32.xlu0 %v334, 120
        %v726 = vpop.permute.xlu0 %725
        %727 = vrot.lane.b32.xlu0 %v335, 120
        %v728 = vpop.permute.xlu0 %727
        %729 = vrot.lane.b32.xlu0 %v336, 120
        %v730 = vpop.permute.xlu0 %729
        %731 = vrot.lane.b32.xlu0 %v337, 120
        %v732 = vpop.permute.xlu0 %731
        %733 = vrot.lane.b32.xlu0 %v338, 120
        %v734 = vpop.permute.xlu0 %733
        %735 = vrot.lane.b32.xlu0 %v339, 120
        %v736 = vpop.permute.xlu0 %735
        %737 = vrot.lane.b32.xlu0 %v340, 120
        %v738 = vpop.permute.xlu0 %737
        %739 = vrot.lane.b32.xlu0 %v341, 120
        %v740 = vpop.permute.xlu0 %739
        %741 = vrot.lane.b32.xlu0 %v342, 120
        %v742 = vpop.permute.xlu0 %741
        %743 = vrot.lane.b32.xlu0 %v343, 120
        %v744 = vpop.permute.xlu0 %743
        %745 = vrot.lane.b32.xlu0 %v344, 120
        %v746 = vpop.permute.xlu0 %745
        %747 = vrot.lane.b32.xlu0 %v345, 120
        %v748 = vpop.permute.xlu0 %747
        %749 = vrot.lane.b32.xlu0 %v346, 120
        %v750 = vpop.permute.xlu0 %749
        %751 = vrot.lane.b32.xlu0 %v347, 120
        %v752 = vpop.permute.xlu0 %751
        %753 = vrot.lane.b32.xlu0 %v348, 120
        %v754 = vpop.permute.xlu0 %753
        %771 = vmatprep.subr.mxu0 0.0
        %772 = vmatpush1.msra.mxu0 %v724
        %773 = vmatprep.subr.mxu0 0.0
        %774 = vmatpush1.msra.mxu0 %v726
        %775 = vmatprep.subr.mxu0 0.0
        %776 = vmatpush1.msra.mxu0 %v728
        %777 = vmatprep.subr.mxu0 0.0
        %778 = vmatpush1.msra.mxu0 %v730
        %779 = vmatprep.subr.mxu0 0.0
        %780 = vmatpush1.msra.mxu0 %v732
        %781 = vmatprep.subr.mxu0 0.0
        %782 = vmatpush1.msra.mxu0 %v734
        %783 = vmatprep.subr.mxu0 0.0
        %784 = vmatpush1.msra.mxu0 %v736
        %785 = vmatprep.subr.mxu0 0.0
        %786 = vmatpush1.msra.mxu0 %v738
        %787 = vmatprep.subr.mxu0 0.0
        %788 = vmatpush1.msra.mxu0 %v740
        %789 = vmatprep.subr.mxu0 0.0
        %790 = vmatpush1.msra.mxu0 %v742
        %791 = vmatprep.subr.mxu0 0.0
        %792 = vmatpush1.msra.mxu0 %v744
        %793 = vmatprep.subr.mxu0 0.0
        %794 = vmatpush1.msra.mxu0 %v746
        %795 = vmatprep.subr.mxu0 0.0
        %796 = vmatpush1.msra.mxu0 %v748
        %797 = vmatprep.subr.mxu0 0.0
        %798 = vmatpush1.msra.mxu0 %v750
        %799 = vmatprep.subr.mxu0 0.0
        %800 = vmatpush1.msra.mxu0 %v752
        %801 = vmatprep.subr.mxu0 0.0
        %802 = vmatpush1.msra.mxu0 %v754
        %803 = vmatprep.subr.mxu0 0.0
        %804 = vmatpush1.msra.mxu0 0.0
        %805 = vmatprep.subr.mxu0 0.0
        %806 = vmatpush1.msra.mxu0 0.0
        %807 = vmatprep.subr.mxu0 0.0
        %808 = vmatpush1.msra.mxu0 0.0
        %809 = vmatprep.subr.mxu0 0.0
        %810 = vmatpush1.msra.mxu0 0.0
        %811 = vmatprep.subr.mxu0 0.0
        %812 = vmatpush1.msra.mxu0 0.0
        %813 = vmatprep.subr.mxu0 0.0
        %814 = vmatpush1.msra.mxu0 0.0
        %815 = vmatprep.subr.mxu0 0.0
        %816 = vmatpush1.msra.mxu0 0.0
        %817 = vmatprep.subr.mxu0 0.0
        %818 = vmatpush1.msra.mxu0 0.0
        %819 = vmatprep.subr.mxu0 0.0
        %820 = vmatpush1.msra.mxu0 0.0
        %821 = vmatprep.subr.mxu0 0.0
        %822 = vmatpush1.msra.mxu0 0.0
        %823 = vmatprep.subr.mxu0 0.0
        %824 = vmatpush1.msra.mxu0 0.0
        %825 = vmatprep.subr.mxu0 0.0
        %826 = vmatpush1.msra.mxu0 0.0
        %827 = vmatprep.subr.mxu0 0.0
        %828 = vmatpush1.msra.mxu0 0.0
        %829 = vmatprep.subr.mxu0 0.0
        %830 = vmatpush1.msra.mxu0 0.0
        %831 = vmatprep.subr.mxu0 0.0
        %832 = vmatpush1.msra.mxu0 0.0
        %833 = vmatprep.subr.mxu0 0.0
        %834 = vmatpush1.msra.mxu0 0.0
        %835 = vmatprep.mubr.f32.mxu0 0.0
        %836 = vmatmul.mubr.f32.gmra.mrb[0].mxu0 %v706
        %v837 = vpop.f32.mrb[0].mxu0
        %v838 = vadd.f32 0.0, %v837
        %v839 = vpop.f32.mrb[0].mxu0
        %840 = vdwg.mxu0
        %842 = vrot.lane.b32.xlu0 %v838, 8
        %v843 = vpop.permute.xlu0 %842
        %vm845 = vcmask 130112
        %846 = vst.msk [vmem:[%s281] sm:$0xff] %vm845, %v843
        %v847 = vpack.c.bf16 %v706, %v706
        %848 = vst [vmem:[%s288 + $0x4] sm:$0xf] %v847
        %849 = vrot.lane.b32.xlu0 %v316, 112
        %v850 = vpop.permute.xlu0 %849
        %851 = vrot.lane.b32.xlu0 %v317, 112
        %v852 = vpop.permute.xlu0 %851
        %853 = vrot.lane.b32.xlu0 %v318, 112
        %v854 = vpop.permute.xlu0 %853
        %855 = vrot.lane.b32.xlu0 %v319, 112
        %v856 = vpop.permute.xlu0 %855
        %857 = vrot.lane.b32.xlu0 %v320, 112
        %v858 = vpop.permute.xlu0 %857
        %859 = vrot.lane.b32.xlu0 %v321, 112
        %v860 = vpop.permute.xlu0 %859
        %861 = vrot.lane.b32.xlu0 %v322, 112
        %v862 = vpop.permute.xlu0 %861
        %863 = vrot.lane.b32.xlu0 %v323, 112
        %v864 = vpop.permute.xlu0 %863
        %865 = vrot.lane.b32.xlu0 %v324, 112
        %v866 = vpop.permute.xlu0 %865
        %867 = vrot.lane.b32.xlu0 %v325, 112
        %v868 = vpop.permute.xlu0 %867
        %869 = vrot.lane.b32.xlu0 %v326, 112
        %v870 = vpop.permute.xlu0 %869
        %871 = vrot.lane.b32.xlu0 %v327, 112
        %v872 = vpop.permute.xlu0 %871
        %873 = vrot.lane.b32.xlu0 %v328, 112
        %v874 = vpop.permute.xlu0 %873
        %875 = vrot.lane.b32.xlu0 %v329, 112
        %v876 = vpop.permute.xlu0 %875
        %877 = vrot.lane.b32.xlu0 %v330, 112
        %v878 = vpop.permute.xlu0 %877
        %879 = vrot.lane.b32.xlu0 %v331, 112
        %v880 = vpop.permute.xlu0 %879
        %881 = vrot.lane.b32.xlu0 %v332, 112
        %v882 = vpop.permute.xlu0 %881
        %v883 = vsel %vm349, %v850, 0
        %v885 = vsel %vm349, %v852, 0
        %v887 = vsel %vm349, %v854, 0
        %v889 = vsel %vm349, %v856, 0
        %v891 = vsel %vm349, %v858, 0
        %v893 = vsel %vm349, %v860, 0
        %v895 = vsel %vm349, %v862, 0
        %v897 = vsel %vm349, %v864, 0
        %v899 = vsel %vm349, %v866, 0
        %v901 = vsel %vm349, %v868, 0
        %v903 = vsel %vm349, %v870, 0
        %v905 = vsel %vm349, %v872, 0
        %v907 = vsel %vm349, %v874, 0
        %v909 = vsel %vm349, %v876, 0
        %v911 = vsel %vm349, %v878, 0
        %v913 = vsel %vm349, %v880, 0
        %v915 = vsel %vm349, %v882, 0
        %917 = vmatprep.subr.mxu0 0.0
        %918 = vmatpush1.xpose.msra.mxu0 %v885
        %919 = vmatprep.subr.mxu0 0.0
        %920 = vmatpush1.xpose.msra.mxu0 %v887
        %921 = vmatprep.subr.mxu0 0.0
        %922 = vmatpush1.xpose.msra.mxu0 %v889
        %923 = vmatprep.subr.mxu0 0.0
        %924 = vmatpush1.xpose.msra.mxu0 %v891
        %925 = vmatprep.subr.mxu0 0.0
        %926 = vmatpush1.xpose.msra.mxu0 %v893
        %927 = vmatprep.subr.mxu0 0.0
        %928 = vmatpush1.xpose.msra.mxu0 %v895
        %929 = vmatprep.subr.mxu0 0.0
        %930 = vmatpush1.xpose.msra.mxu0 %v897
        %931 = vmatprep.subr.mxu0 0.0
        %932 = vmatpush1.xpose.msra.mxu0 %v899
        %933 = vmatprep.subr.mxu0 0.0
        %934 = vmatpush1.xpose.msra.mxu0 %v901
        %935 = vmatprep.subr.mxu0 0.0
        %936 = vmatpush1.xpose.msra.mxu0 %v903
        %937 = vmatprep.subr.mxu0 0.0
        %938 = vmatpush1.xpose.msra.mxu0 %v905
        %939 = vmatprep.subr.mxu0 0.0
        %940 = vmatpush1.xpose.msra.mxu0 %v907
        %941 = vmatprep.subr.mxu0 0.0
        %942 = vmatpush1.xpose.msra.mxu0 %v909
        %943 = vmatprep.subr.mxu0 0.0
        %944 = vmatpush1.xpose.msra.mxu0 %v911
        %945 = vmatprep.subr.mxu0 0.0
        %946 = vmatpush1.xpose.msra.mxu0 %v913
        %947 = vmatprep.subr.mxu0 0.0
        %948 = vmatpush1.xpose.msra.mxu0 %v915
        %949 = vmatprep.subr.mxu0 0.0
        %950 = vmatpush1.xpose.msra.mxu0 0.0
        %951 = vmatprep.subr.mxu0 0.0
        %952 = vmatpush1.xpose.msra.mxu0 0.0
        %953 = vmatprep.subr.mxu0 0.0
        %954 = vmatpush1.xpose.msra.mxu0 0.0
        %955 = vmatprep.subr.mxu0 0.0
        %956 = vmatpush1.xpose.msra.mxu0 0.0
        %957 = vmatprep.subr.mxu0 0.0
        %958 = vmatpush1.xpose.msra.mxu0 0.0
        %959 = vmatprep.subr.mxu0 0.0
        %960 = vmatpush1.xpose.msra.mxu0 0.0
        %961 = vmatprep.subr.mxu0 0.0
        %962 = vmatpush1.xpose.msra.mxu0 0.0
        %963 = vmatprep.subr.mxu0 0.0
        %964 = vmatpush1.xpose.msra.mxu0 0.0
        %965 = vmatprep.subr.mxu0 0.0
        %966 = vmatpush1.xpose.msra.mxu0 0.0
        %967 = vmatprep.subr.mxu0 0.0
        %968 = vmatpush1.xpose.msra.mxu0 0.0
        %969 = vmatprep.subr.mxu0 0.0
        %970 = vmatpush1.xpose.msra.mxu0 0.0
        %971 = vmatprep.subr.mxu0 0.0
        %972 = vmatpush1.xpose.msra.mxu0 0.0
        %973 = vmatprep.subr.mxu0 0.0
        %974 = vmatpush1.xpose.msra.mxu0 0.0
        %975 = vmatprep.subr.mxu0 0.0
        %976 = vmatpush1.xpose.msra.mxu0 0.0
        %977 = vmatprep.subr.mxu0 0.0
        %978 = vmatpush1.xpose.msra.mxu0 0.0
        %979 = vmatprep.subr.mxu0 0.0
        %980 = vmatpush1.xpose.msra.mxu0 0.0
        %981 = vmatprep.mubr.f32.mxu0 0.0
        %982 = vmatmul.mubr.f32.gmra.mrb[0].mxu0 %v883
        %v983 = vpop.f32.mrb[0].mxu0
        %v984 = vadd.f32 0.0, %v983
        %v985 = vpop.f32.mrb[0].mxu0
        %986 = vdwg.mxu0
        %v987 = vsel %vm473, %v984, -1e+30
        %v988 = vmul.f32 %v987, 0.35355338
        %989 = vmax.xlane.f32.xlu0 %v988
        %v990 = vpop.xlane.xlu0 %989
        %v991 = vsub.f32 %v988, %v990
        %v992 = vmul.f32 %v991, 1.442695
        %v993 = vpow.pop %v992
        %994 = vadd.xlane.f32.xlu0 %v993
        %v995 = vpop.xlane.xlu0 %994
        %v996 = vrcp.pop %v995
        %v997 = vmul.f32 %v993, %v996
        %998 = vrot.lane.b32.xlu0 %v333, 112
        %v999 = vpop.permute.xlu0 %998
        %1000 = vrot.lane.b32.xlu0 %v334, 112
        %v1001 = vpop.permute.xlu0 %1000
        %1002 = vrot.lane.b32.xlu0 %v335, 112
        %v1003 = vpop.permute.xlu0 %1002
        %1004 = vrot.lane.b32.xlu0 %v336, 112
        %v1005 = vpop.permute.xlu0 %1004
        %1006 = vrot.lane.b32.xlu0 %v337, 112
        %v1007 = vpop.permute.xlu0 %1006
        %1008 = vrot.lane.b32.xlu0 %v338, 112
        %v1009 = vpop.permute.xlu0 %1008
        %1010 = vrot.lane.b32.xlu0 %v339, 112
        %v1011 = vpop.permute.xlu0 %1010
        %1012 = vrot.lane.b32.xlu0 %v340, 112
        %v1013 = vpop.permute.xlu0 %1012
        %1014 = vrot.lane.b32.xlu0 %v341, 112
        %v1015 = vpop.permute.xlu0 %1014
        %1016 = vrot.lane.b32.xlu0 %v342, 112
        %v1017 = vpop.permute.xlu0 %1016
        %1018 = vrot.lane.b32.xlu0 %v343, 112
        %v1019 = vpop.permute.xlu0 %1018
        %1020 = vrot.lane.b32.xlu0 %v344, 112
        %v1021 = vpop.permute.xlu0 %1020
        %1022 = vrot.lane.b32.xlu0 %v345, 112
        %v1023 = vpop.permute.xlu0 %1022
        %1024 = vrot.lane.b32.xlu0 %v346, 112
        %v1025 = vpop.permute.xlu0 %1024
        %1026 = vrot.lane.b32.xlu0 %v347, 112
        %v1027 = vpop.permute.xlu0 %1026
        %1028 = vrot.lane.b32.xlu0 %v348, 112
        %v1029 = vpop.permute.xlu0 %1028
        %1046 = vmatprep.subr.mxu0 0.0
        %1047 = vmatpush1.msra.mxu0 %v999
        %1048 = vmatprep.subr.mxu0 0.0
        %1049 = vmatpush1.msra.mxu0 %v1001
        %1050 = vmatprep.subr.mxu0 0.0
        %1051 = vmatpush1.msra.mxu0 %v1003
        %1052 = vmatprep.subr.mxu0 0.0
        %1053 = vmatpush1.msra.mxu0 %v1005
        %1054 = vmatprep.subr.mxu0 0.0
        %1055 = vmatpush1.msra.mxu0 %v1007
        %1056 = vmatprep.subr.mxu0 0.0
        %1057 = vmatpush1.msra.mxu0 %v1009
        %1058 = vmatprep.subr.mxu0 0.0
        %1059 = vmatpush1.msra.mxu0 %v1011
        %1060 = vmatprep.subr.mxu0 0.0
        %1061 = vmatpush1.msra.mxu0 %v1013
        %1062 = vmatprep.subr.mxu0 0.0
        %1063 = vmatpush1.msra.mxu0 %v1015
        %1064 = vmatprep.subr.mxu0 0.0
        %1065 = vmatpush1.msra.mxu0 %v1017
        %1066 = vmatprep.subr.mxu0 0.0
        %1067 = vmatpush1.msra.mxu0 %v1019
        %1068 = vmatprep.subr.mxu0 0.0
        %1069 = vmatpush1.msra.mxu0 %v1021
        %1070 = vmatprep.subr.mxu0 0.0
        %1071 = vmatpush1.msra.mxu0 %v1023
        %1072 = vmatprep.subr.mxu0 0.0
        %1073 = vmatpush1.msra.mxu0 %v1025
        %1074 = vmatprep.subr.mxu0 0.0
        %1075 = vmatpush1.msra.mxu0 %v1027
        %1076 = vmatprep.subr.mxu0 0.0
        %1077 = vmatpush1.msra.mxu0 %v1029
        %1078 = vmatprep.subr.mxu0 0.0
        %1079 = vmatpush1.msra.mxu0 0.0
        %1080 = vmatprep.subr.mxu0 0.0
        %1081 = vmatpush1.msra.mxu0 0.0
        %1082 = vmatprep.subr.mxu0 0.0
        %1083 = vmatpush1.msra.mxu0 0.0
        %1084 = vmatprep.subr.mxu0 0.0
        %1085 = vmatpush1.msra.mxu0 0.0
        %1086 = vmatprep.subr.mxu0 0.0
        %1087 = vmatpush1.msra.mxu0 0.0
        %1088 = vmatprep.subr.mxu0 0.0
        %1089 = vmatpush1.msra.mxu0 0.0
        %1090 = vmatprep.subr.mxu0 0.0
        %1091 = vmatpush1.msra.mxu0 0.0
        %1092 = vmatprep.subr.mxu0 0.0
        %1093 = vmatpush1.msra.mxu0 0.0
        %1094 = vmatprep.subr.mxu0 0.0
        %1095 = vmatpush1.msra.mxu0 0.0
        %1096 = vmatprep.subr.mxu0 0.0
        %1097 = vmatpush1.msra.mxu0 0.0
        %1098 = vmatprep.subr.mxu0 0.0
        %1099 = vmatpush1.msra.mxu0 0.0
        %1100 = vmatprep.subr.mxu0 0.0
        %1101 = vmatpush1.msra.mxu0 0.0
        %1102 = vmatprep.subr.mxu0 0.0
        %1103 = vmatpush1.msra.mxu0 0.0
        %1104 = vmatprep.subr.mxu0 0.0
        %1105 = vmatpush1.msra.mxu0 0.0
        %1106 = vmatprep.subr.mxu0 0.0
        %1107 = vmatpush1.msra.mxu0 0.0
        %1108 = vmatprep.subr.mxu0 0.0
        %1109 = vmatpush1.msra.mxu0 0.0
        %1110 = vmatprep.mubr.f32.mxu0 0.0
        %1111 = vmatmul.mubr.f32.gmra.mrb[0].mxu0 %v997
        %v1112 = vpop.f32.mrb[0].mxu0
        %v1113 = vadd.f32 0.0, %v1112
        %v1114 = vpop.f32.mrb[0].mxu0
        %1115 = vdwg.mxu0
        %1117 = vrot.lane.b32.xlu0 %v1113, 16
        %v1118 = vpop.permute.xlu0 %1117
        %vm1120 = vcmask 195712
        %1121 = vst.msk [vmem:[%s281] sm:$0xff] %vm1120, %v1118
        %v1122 = vpack.c.bf16 %v997, %v997
        %1123 = vst [vmem:[%s288 + $0x8] sm:$0xf] %v1122
        %1124 = vrot.lane.b32.xlu0 %v316, 104
        %v1125 = vpop.permute.xlu0 %1124
        %1126 = vrot.lane.b32.xlu0 %v317, 104
        %v1127 = vpop.permute.xlu0 %1126
        %1128 = vrot.lane.b32.xlu0 %v318, 104
        %v1129 = vpop.permute.xlu0 %1128
        %1130 = vrot.lane.b32.xlu0 %v319, 104
        %v1131 = vpop.permute.xlu0 %1130
        %1132 = vrot.lane.b32.xlu0 %v320, 104
        %v1133 = vpop.permute.xlu0 %1132
        %1134 = vrot.lane.b32.xlu0 %v321, 104
        %v1135 = vpop.permute.xlu0 %1134
        %1136 = vrot.lane.b32.xlu0 %v322, 104
        %v1137 = vpop.permute.xlu0 %1136
        %1138 = vrot.lane.b32.xlu0 %v323, 104
        %v1139 = vpop.permute.xlu0 %1138
        %1140 = vrot.lane.b32.xlu0 %v324, 104
        %v1141 = vpop.permute.xlu0 %1140
        %1142 = vrot.lane.b32.xlu0 %v325, 104
        %v1143 = vpop.permute.xlu0 %1142
        %1144 = vrot.lane.b32.xlu0 %v326, 104
        %v1145 = vpop.permute.xlu0 %1144
        %1146 = vrot.lane.b32.xlu0 %v327, 104
        %v1147 = vpop.permute.xlu0 %1146
        %1148 = vrot.lane.b32.xlu0 %v328, 104
        %v1149 = vpop.permute.xlu0 %1148
        %1150 = vrot.lane.b32.xlu0 %v329, 104
        %v1151 = vpop.permute.xlu0 %1150
        %1152 = vrot.lane.b32.xlu0 %v330, 104
        %v1153 = vpop.permute.xlu0 %1152
        %1154 = vrot.lane.b32.xlu0 %v331, 104
        %v1155 = vpop.permute.xlu0 %1154
        %1156 = vrot.lane.b32.xlu0 %v332, 104
        %v1157 = vpop.permute.xlu0 %1156
        %v1158 = vsel %vm349, %v1125, 0
        %v1160 = vsel %vm349, %v1127, 0
        %v1162 = vsel %vm349, %v1129, 0
        %v1164 = vsel %vm349, %v1131, 0
        %v1166 = vsel %vm349, %v1133, 0
        %v1168 = vsel %vm349, %v1135, 0
        %v1170 = vsel %vm349, %v1137, 0
        %v1172 = vsel %vm349, %v1139, 0
        %v1174 = vsel %vm349, %v1141, 0
        %v1176 = vsel %vm349, %v1143, 0
        %v1178 = vsel %vm349, %v1145, 0
        %v1180 = vsel %vm349, %v1147, 0
        %v1182 = vsel %vm349, %v1149, 0
        %v1184 = vsel %vm349, %v1151, 0
        %v1186 = vsel %vm349, %v1153, 0
        %v1188 = vsel %vm349, %v1155, 0
        %v1190 = vsel %vm349, %v1157, 0
        %1192 = vmatprep.subr.mxu0 0.0
        %1193 = vmatpush1.xpose.msra.mxu0 %v1160
        %1194 = vmatprep.subr.mxu0 0.0
        %1195 = vmatpush1.xpose.msra.mxu0 %v1162
        %1196 = vmatprep.subr.mxu0 0.0
        %1197 = vmatpush1.xpose.msra.mxu0 %v1164
        %1198 = vmatprep.subr.mxu0 0.0
        %1199 = vmatpush1.xpose.msra.mxu0 %v1166
        %1200 = vmatprep.subr.mxu0 0.0
        %1201 = vmatpush1.xpose.msra.mxu0 %v1168
        %1202 = vmatprep.subr.mxu0 0.0
        %1203 = vmatpush1.xpose.msra.mxu0 %v1170
        %1204 = vmatprep.subr.mxu0 0.0
        %1205 = vmatpush1.xpose.msra.mxu0 %v1172
        %1206 = vmatprep.subr.mxu0 0.0
        %1207 = vmatpush1.xpose.msra.mxu0 %v1174
        %1208 = vmatprep.subr.mxu0 0.0
        %1209 = vmatpush1.xpose.msra.mxu0 %v1176
        %1210 = vmatprep.subr.mxu0 0.0
        %1211 = vmatpush1.xpose.msra.mxu0 %v1178
        %1212 = vmatprep.subr.mxu0 0.0
        %1213 = vmatpush1.xpose.msra.mxu0 %v1180
        %1214 = vmatprep.subr.mxu0 0.0
        %1215 = vmatpush1.xpose.msra.mxu0 %v1182
        %1216 = vmatprep.subr.mxu0 0.0
        %1217 = vmatpush1.xpose.msra.mxu0 %v1184
        %1218 = vmatprep.subr.mxu0 0.0
        %1219 = vmatpush1.xpose.msra.mxu0 %v1186
        %1220 = vmatprep.subr.mxu0 0.0
        %1221 = vmatpush1.xpose.msra.mxu0 %v1188
        %1222 = vmatprep.subr.mxu0 0.0
        %1223 = vmatpush1.xpose.msra.mxu0 %v1190
        %1224 = vmatprep.subr.mxu0 0.0
        %1225 = vmatpush1.xpose.msra.mxu0 0.0
        %1226 = vmatprep.subr.mxu0 0.0
        %1227 = vmatpush1.xpose.msra.mxu0 0.0
        %1228 = vmatprep.subr.mxu0 0.0
        %1229 = vmatpush1.xpose.msra.mxu0 0.0
        %1230 = vmatprep.subr.mxu0 0.0
        %1231 = vmatpush1.xpose.msra.mxu0 0.0
        %1232 = vmatprep.subr.mxu0 0.0
        %1233 = vmatpush1.xpose.msra.mxu0 0.0
        %1234 = vmatprep.subr.mxu0 0.0
        %1235 = vmatpush1.xpose.msra.mxu0 0.0
        %1236 = vmatprep.subr.mxu0 0.0
        %1237 = vmatpush1.xpose.msra.mxu0 0.0
        %1238 = vmatprep.subr.mxu0 0.0
        %1239 = vmatpush1.xpose.msra.mxu0 0.0
        %1240 = vmatprep.subr.mxu0 0.0
        %1241 = vmatpush1.xpose.msra.mxu0 0.0
        %1242 = vmatprep.subr.mxu0 0.0
        %1243 = vmatpush1.xpose.msra.mxu0 0.0
        %1244 = vmatprep.subr.mxu0 0.0
        %1245 = vmatpush1.xpose.msra.mxu0 0.0
        %1246 = vmatprep.subr.mxu0 0.0
        %1247 = vmatpush1.xpose.msra.mxu0 0.0
        %1248 = vmatprep.subr.mxu0 0.0
        %1249 = vmatpush1.xpose.msra.mxu0 0.0
        %1250 = vmatprep.subr.mxu0 0.0
        %1251 = vmatpush1.xpose.msra.mxu0 0.0
        %1252 = vmatprep.subr.mxu0 0.0
        %1253 = vmatpush1.xpose.msra.mxu0 0.0
        %1254 = vmatprep.subr.mxu0 0.0
        %1255 = vmatpush1.xpose.msra.mxu0 0.0
        %1256 = vmatprep.mubr.f32.mxu0 0.0
        %1257 = vmatmul.mubr.f32.gmra.mrb[0].mxu0 %v1158
        %v1258 = vpop.f32.mrb[0].mxu0
        %v1259 = vadd.f32 0.0, %v1258
        %v1260 = vpop.f32.mrb[0].mxu0
        %1261 = vdwg.mxu0
        %v1262 = vsel %vm473, %v1259, -1e+30
        %v1263 = vmul.f32 %v1262, 0.35355338
        %1264 = vmax.xlane.f32.xlu0 %v1263
        %v1265 = vpop.xlane.xlu0 %1264
        %v1266 = vsub.f32 %v1263, %v1265
        %v1267 = vmul.f32 %v1266, 1.442695
        %v1268 = vpow.pop %v1267
        %1269 = vadd.xlane.f32.xlu0 %v1268
        %v1270 = vpop.xlane.xlu0 %1269
        %v1271 = vrcp.pop %v1270
        %v1272 = vmul.f32 %v1268, %v1271
        %1273 = vrot.lane.b32.xlu0 %v333, 104
        %v1274 = vpop.permute.xlu0 %1273
        %1275 = vrot.lane.b32.xlu0 %v334, 104
        %v1276 = vpop.permute.xlu0 %1275
        %1277 = vrot.lane.b32.xlu0 %v335, 104
        %v1278 = vpop.permute.xlu0 %1277
        %1279 = vrot.lane.b32.xlu0 %v336, 104
        %v1280 = vpop.permute.xlu0 %1279
        %1281 = vrot.lane.b32.xlu0 %v337, 104
        %v1282 = vpop.permute.xlu0 %1281
        %1283 = vrot.lane.b32.xlu0 %v338, 104
        %v1284 = vpop.permute.xlu0 %1283
        %1285 = vrot.lane.b32.xlu0 %v339, 104
        %v1286 = vpop.permute.xlu0 %1285
        %1287 = vrot.lane.b32.xlu0 %v340, 104
        %v1288 = vpop.permute.xlu0 %1287
        %1289 = vrot.lane.b32.xlu0 %v341, 104
        %v1290 = vpop.permute.xlu0 %1289
        %1291 = vrot.lane.b32.xlu0 %v342, 104
        %v1292 = vpop.permute.xlu0 %1291
        %1293 = vrot.lane.b32.xlu0 %v343, 104
        %v1294 = vpop.permute.xlu0 %1293
        %1295 = vrot.lane.b32.xlu0 %v344, 104
        %v1296 = vpop.permute.xlu0 %1295
        %1297 = vrot.lane.b32.xlu0 %v345, 104
        %v1298 = vpop.permute.xlu0 %1297
        %1299 = vrot.lane.b32.xlu0 %v346, 104
        %v1300 = vpop.permute.xlu0 %1299
        %1301 = vrot.lane.b32.xlu0 %v347, 104
        %v1302 = vpop.permute.xlu0 %1301
        %1303 = vrot.lane.b32.xlu0 %v348, 104
        %v1304 = vpop.permute.xlu0 %1303
        %1321 = vmatprep.subr.mxu0 0.0
        %1322 = vmatpush1.msra.mxu0 %v1274
        %1323 = vmatprep.subr.mxu0 0.0
        %1324 = vmatpush1.msra.mxu0 %v1276
        %1325 = vmatprep.subr.mxu0 0.0
        %1326 = vmatpush1.msra.mxu0 %v1278
        %1327 = vmatprep.subr.mxu0 0.0
        %1328 = vmatpush1.msra.mxu0 %v1280
        %1329 = vmatprep.subr.mxu0 0.0
        %1330 = vmatpush1.msra.mxu0 %v1282
        %1331 = vmatprep.subr.mxu0 0.0
        %1332 = vmatpush1.msra.mxu0 %v1284
        %1333 = vmatprep.subr.mxu0 0.0
        %1334 = vmatpush1.msra.mxu0 %v1286
        %1335 = vmatprep.subr.mxu0 0.0
        %1336 = vmatpush1.msra.mxu0 %v1288
        %1337 = vmatprep.subr.mxu0 0.0
        %1338 = vmatpush1.msra.mxu0 %v1290
        %1339 = vmatprep.subr.mxu0 0.0
        %1340 = vmatpush1.msra.mxu0 %v1292
        %1341 = vmatprep.subr.mxu0 0.0
        %1342 = vmatpush1.msra.mxu0 %v1294
        %1343 = vmatprep.subr.mxu0 0.0
        %1344 = vmatpush1.msra.mxu0 %v1296
        %1345 = vmatprep.subr.mxu0 0.0
        %1346 = vmatpush1.msra.mxu0 %v1298
        %1347 = vmatprep.subr.mxu0 0.0
        %1348 = vmatpush1.msra.mxu0 %v1300
        %1349 = vmatprep.subr.mxu0 0.0
        %1350 = vmatpush1.msra.mxu0 %v1302
        %1351 = vmatprep.subr.mxu0 0.0
        %1352 = vmatpush1.msra.mxu0 %v1304
        %1353 = vmatprep.subr.mxu0 0.0
        %1354 = vmatpush1.msra.mxu0 0.0
        %1355 = vmatprep.subr.mxu0 0.0
        %1356 = vmatpush1.msra.mxu0 0.0
        %1357 = vmatprep.subr.mxu0 0.0
        %1358 = vmatpush1.msra.mxu0 0.0
        %1359 = vmatprep.subr.mxu0 0.0
        %1360 = vmatpush1.msra.mxu0 0.0
        %1361 = vmatprep.subr.mxu0 0.0
        %1362 = vmatpush1.msra.mxu0 0.0
        %1363 = vmatprep.subr.mxu0 0.0
        %1364 = vmatpush1.msra.mxu0 0.0
        %1365 = vmatprep.subr.mxu0 0.0
        %1366 = vmatpush1.msra.mxu0 0.0
        %1367 = vmatprep.subr.mxu0 0.0
        %1368 = vmatpush1.msra.mxu0 0.0
        %1369 = vmatprep.subr.mxu0 0.0
        %1370 = vmatpush1.msra.mxu0 0.0
        %1371 = vmatprep.subr.mxu0 0.0
        %1372 = vmatpush1.msra.mxu0 0.0
        %1373 = vmatprep.subr.mxu0 0.0
        %1374 = vmatpush1.msra.mxu0 0.0
        %1375 = vmatprep.subr.mxu0 0.0
        %1376 = vmatpush1.msra.mxu0 0.0
        %1377 = vmatprep.subr.mxu0 0.0
        %1378 = vmatpush1.msra.mxu0 0.0
        %1379 = vmatprep.subr.mxu0 0.0
        %1380 = vmatpush1.msra.mxu0 0.0
        %1381 = vmatprep.subr.mxu0 0.0
        %1382 = vmatpush1.msra.mxu0 0.0
        %1383 = vmatprep.subr.mxu0 0.0
        %1384 = vmatpush1.msra.mxu0 0.0
        %1385 = vmatprep.mubr.f32.mxu0 0.0
        %1386 = vmatmul.mubr.f32.gmra.mrb[0].mxu0 %v1272
        %v1387 = vpop.f32.mrb[0].mxu0
        %v1388 = vadd.f32 0.0, %v1387
        %v1389 = vpop.f32.mrb[0].mxu0
        %1390 = vdwg.mxu0
        %1392 = vrot.lane.b32.xlu0 %v1388, 24
        %v1393 = vpop.permute.xlu0 %1392
        %vm1395 = vcmask 261312
        %1396 = vst.msk [vmem:[%s281] sm:$0xff] %vm1395, %v1393
        %v1397 = vpack.c.bf16 %v1272, %v1272
        %1398 = vst [vmem:[%s288 + $0xc] sm:$0xf] %v1397
        %s1399 = sand.u32 %s139, 1
        %s1400 = scalar_lea.sflag [#allocation3], %s1399
        %s1401 = sand.u32 %s139, 1
        %s1402 = smul.addr %s1401, 8
        %s1403 = scalar_lea.vmem [#allocation2], %s1402
        %s1404 = sand.u32 %s169, 1
        %s1405 = scalar_lea.sflag [#allocation5], %s1404
        %s1406 = sand.u32 %s169, 1
        %s1407 = smul.addr %s1406, 16
        %s1408 = scalar_lea.vmem [#allocation4], %s1407
        // Predicated region
        $region33: #{tpu_custom_call.1} parent=31 // pred_check
          %p1409 = pneg %p149
        $region34: #{tpu_custom_call.1} parent=31 // pred_check_branch
          %1411 = sbr.rel (%p1409) target = $region36
        $region35: #{tpu_custom_call.1} parent=31 // pred_region
          %s1413 = ssub.s32 128, 128
          %1414 = vsyncadd %s1400, %s1413
          %s1415 = sadd.s32 %s28, %s29
          %s1416 = sadd.s32 %s1415, %s27
          %s1417 = smul.addr %s1416, 128
          %s1418 = scalar_lea.hbm %s3, %s1417
          %s1420 = sshll.u32 %s1403, 4
          %s1421 = int_to_ptr.vmem [resolvable:$true] %s1420
          %1423 = dma.vmem_to_hbm [thread:$0]  %s1421, 128, %s1418, %s1400
        $region36: #{tpu_custom_call.1} parent=31 // pred_fallthru
          _
        // Predicated region
        $region37: #{tpu_custom_call.1} parent=31 // pred_check
          %p1424 = pneg %p179
        $region38: #{tpu_custom_call.1} parent=31 // pred_check_branch
          %1426 = sbr.rel (%p1424) target = $region40
        $region39: #{tpu_custom_call.1} parent=31 // pred_region
          %s1427 = smul.u32 4, %s28
          %s1429 = ssub.s32 256, 256
          %1430 = vsyncadd %s1405, %s1429
          %s1431 = smul.addr %s29, 4
          %s1432 = sadd.s32 %s1427, %s1431
          %s1433 = smul.addr %s27, 4
          %s1434 = sadd.s32 %s1432, %s1433
          %s1435 = smul.addr %s1434, 64
          %s1436 = scalar_lea.hbm %s4, %s1435
          %s1438 = sshll.u32 %s1408, 4
          %s1439 = int_to_ptr.vmem [resolvable:$true] %s1438
          %1441 = dma.vmem_to_hbm [thread:$0]  %s1439, 256, %s1436, %s1405
        $region40: #{tpu_custom_call.1} parent=31 // pred_fallthru
          _
      $region32: #{tpu_custom_call.1} parent=5 // pred_fallthru
        _
      %p1442 = scmp.le.s32.totalorder 2, %s17
      // Predicated region
      $region41: #{tpu_custom_call.1} parent=5 // pred_check
        %p1443 = pneg %p1442
      $region42: #{tpu_custom_call.1} parent=5 // pred_check_branch
        %1445 = sbr.rel (%p1443) target = $region44
      $region43: #{tpu_custom_call.1} parent=5 // pred_region
        %s1446 = ssub.s32 %s17, 2
        // Predicated region
        $region45: #{tpu_custom_call.1} parent=43 // pred_check
          %p1447 = pneg %p155
        $region46: #{tpu_custom_call.1} parent=43 // pred_check_branch
          %1449 = sbr.rel (%p1447) target = $region48
        $region47: #{tpu_custom_call.1} parent=43 // pred_region
          %s1450 = sand.u32 %s140, 1
          %s1451 = scalar_lea.sflag [#allocation3], %s1450
          %s1452 = sand.u32 %s140, 1
          %s1453 = smul.addr %s1452, 8
          %s1454 = scalar_lea.vmem [#allocation2], %s1453
          %1455 = dma.done %s1451, 128
        $region48: #{tpu_custom_call.1} parent=43 // pred_fallthru
          _
        // Predicated region
        $region49: #{tpu_custom_call.1} parent=43 // pred_check
          %p1456 = pneg %p185
        $region50: #{tpu_custom_call.1} parent=43 // pred_check_branch
          %1458 = sbr.rel (%p1456) target = $region52
        $region51: #{tpu_custom_call.1} parent=43 // pred_region
          %s1459 = sand.u32 %s170, 1
          %s1460 = scalar_lea.sflag [#allocation5], %s1459
          %s1461 = sand.u32 %s170, 1
          %s1462 = smul.addr %s1461, 16
          %s1463 = scalar_lea.vmem [#allocation4], %s1462
          %1464 = dma.done %s1460, 256
        $region52: #{tpu_custom_call.1} parent=43 // pred_fallthru
          _
      $region44: #{tpu_custom_call.1} parent=5 // pred_fallthru
        _
    $region6: #{tpu_custom_call.1} parent=1 // loop_footer
      %s21 = sadd.s32 1, %s17
    $region7: #{tpu_custom_call.1} parent=1 // loop_footer_branch
      %16 = sbr.rel target = $region3
    $region8: #{tpu_custom_call.1} parent=1 // loop_exit
      _
    %1465 = vsyncpa [#allocation3], 1
    %s1466 = scalar_lea.sflag [#allocation3], 1
    %1467 = vsyncpa %s1466, 1
    %1468 = vsyncpa [#allocation5], 1
    %s1469 = scalar_lea.sflag [#allocation5], 1
    %1470 = vsyncpa %s1469, 1

</llo_original>
